<compile_context>
chip_gen: v5e
topology: v5e:2x2
jax: 0.10.0
libtpu: 0.0.40
codegen_flags: <defaults>
</compile_context>

<pallas_src>
import jax
import jax.numpy as jnp
from jax.experimental import pallas as pl
from jax.experimental.pallas import tpu as pltpu


def _round_up(x, m):
    return (x + m - 1) // m * m


# ----------------------------------------------------------------------------
# Pallas kernel: one M-tile of the im2col-ed conv:  relu(x @ w + b)
# ----------------------------------------------------------------------------
def _matmul_bias_relu_kernel(x_ref, w_ref, b_ref, o_ref):
    """x_ref: [TM, Kp] bf16 im2col rows for this tile.
    w_ref: [Kp, Cp] bf16 BN-scaled conv weights (VMEM-resident, constant index).
    b_ref: [1,  Cp] f32  folded BN bias (VMEM-resident).
    o_ref: [TM, Cp] output tile (lane-dense / full-dim last axis)."""
    acc = jnp.dot(x_ref[...], w_ref[...], preferred_element_type=jnp.float32)
    o_ref[...] = jnp.maximum(acc + b_ref[...], 0.0).astype(o_ref.dtype)


# ----------------------------------------------------------------------------
# Fused Conv3d(k=3, s=2, p=1, bias=False) + BatchNorm3d + ReLU (channels-last)
# ----------------------------------------------------------------------------
def conv3x3x3_s2_bn_relu(x, w, gamma, beta, rmean, rvar, *, eps=1e-4,
                         out_dtype=jnp.bfloat16, pad_cout_to=None):
    """x: [B, D, H, W, Cin] channels-last.   w: [Cout, Cin, 3, 3, 3] (PyTorch).
    Returns [B, Do, Ho, Wo, Cp] where Cp = Cout, or Cout rounded up to
    `pad_cout_to` (the padded channels are exactly zero)."""
    B, D, H, W, Cin = x.shape
    Cout, Cin_w = int(w.shape[0]), int(w.shape[1])
    assert Cin == Cin_w, (Cin, Cin_w)
    Do, Ho, Wo = (D - 1) // 2 + 1, (H - 1) // 2 + 1, (W - 1) // 2 + 1

    K = 27 * Cin
    Kp = _round_up(K, 128)                          # lane-dense contraction dim
    Cp = _round_up(Cout, pad_cout_to) if pad_cout_to else Cout

    M = B * Do * Ho * Wo
    # >= 2 grid steps (both v7x TensorCores busy) but <= 512 rows per step.
    TM = min(512, _round_up(max(M // 2, 8), 8))
    Mp = _round_up(M, TM)

    # ---- host side: pad + strided-slice im2col (single XLA fusion) ----------
    xb = x.astype(jnp.bfloat16)
    xp = jnp.pad(xb, ((0, 0), (1, 1), (1, 1), (1, 1), (0, 0)))
    taps = [xp[:, kd:kd + 2 * Do:2, kh:kh + 2 * Ho:2, kw:kw + 2 * Wo:2, :]
            for kd in range(3) for kh in range(3) for kw in range(3)]
    cols = jnp.stack(taps, axis=-2).reshape(M, K)             # [M, 27*Cin]
    cols = jnp.pad(cols, ((0, Mp - M), (0, Kp - K)))          # M/K pad (zeros)

    # ---- fold inference BatchNorm into the weights (scale) and a bias -------
    inv_std = 1.0 / jnp.sqrt(rvar.astype(jnp.float32) + eps)
    scale = gamma.astype(jnp.float32) * inv_std                        # [Cout]
    bias = beta.astype(jnp.float32) - rmean.astype(jnp.float32) * scale
    wt = jnp.transpose(w.astype(jnp.float32), (2, 3, 4, 1, 0))   # kd,kh,kw,Ci,Co
    wt = wt.reshape(K, Cout) * scale
    wt = jnp.pad(wt, ((0, Kp - K), (0, Cp - Cout))).astype(jnp.bfloat16)
    biasp = jnp.pad(bias, (0, Cp - Cout)).reshape(1, Cp)

    # ---- VMEM budget: double-buffered LHS/out tiles + resident weights ------
    out_isz = jnp.dtype(out_dtype).itemsize
    work = (2 * TM * Kp * 2          # LHS tile, double-buffered, bf16
            + 2 * Kp * Cp * 2        # resident weights (+1 spare buffer)
            + 2 * TM * Cp * out_isz  # output tile, double-buffered
            + 2 * Cp * 4)            # bias
    vmem_limit = int(min(100 << 20, max(4 << 20, 2 * work)))

    out = pl.pallas_call(
        _matmul_bias_relu_kernel,
        out_shape=jax.ShapeDtypeStruct((Mp, Cp), out_dtype),
        grid_spec=pltpu.PrefetchScalarGridSpec(
            num_scalar_prefetch=0,
            grid=(Mp // TM,),
            in_specs=[
                pl.BlockSpec((TM, Kp), lambda i: (i, 0)),
                pl.BlockSpec((Kp, Cp), lambda i: (0, 0)),   # weights: resident
                pl.BlockSpec((1, Cp), lambda i: (0, 0)),    # bias:    resident
            ],
            out_specs=pl.BlockSpec((TM, Cp), lambda i: (i, 0)),
        ),
        compiler_params=pltpu.CompilerParams(
            dimension_semantics=("parallel",),
            vmem_limit_bytes=vmem_limit,
        ),
    )(cols, wt, biasp)

    # Padded M rows hold relu(bias) garbage -> sliced off here.
    return out[:M].reshape(B, Do, Ho, Wo, Cp)


# ----------------------------------------------------------------------------
# PatchEmbed3D forward (matches the PyTorch module, NCDHW in / NCDHW out)
# ----------------------------------------------------------------------------
def patch_embed_3d_forward(params, x):
    """x: [B, in_chans, D, H, W] (NCDHW, like PyTorch)."""
    dim = params["w2"].shape[0]
    # proj = nn.Identity()
    x_cl = jnp.transpose(x, (0, 2, 3, 4, 1))                  # -> channels-last
    # conv1: native Cout = in_dim (no channel pad) so conv2's K has no zeros.
    y = conv3x3x3_s2_bn_relu(x_cl, params["w1"],
                             params["bn1_gamma"], params["bn1_beta"],
                             params["bn1_mean"], params["bn1_var"],
                             eps=1e-4, out_dtype=jnp.bfloat16, pad_cout_to=None)
    # conv2: Cout padded to 128 for lane-dense stores; sliced below.
    y = conv3x3x3_s2_bn_relu(y, params["w2"],
                             params["bn2_gamma"], params["bn2_beta"],
                             params["bn2_mean"], params["bn2_var"],
                             eps=1e-4, out_dtype=jnp.float32, pad_cout_to=128)
    y = y[..., :dim]                                          # strip channel pad
    return jnp.transpose(y, (0, 4, 1, 2, 3))                  # back to NCDHW


def init_params(key, in_chans=2, in_dim=64, dim=96):
    ks = jax.random.split(key, 10)

    def bn(kg, kb, km, kv, c):
        return (1.0 + 0.1 * jax.random.normal(kg, (c,), jnp.float32),
                0.1 * jax.random.normal(kb, (c,), jnp.float32),
                0.05 * jax.random.normal(km, (c,), jnp.float32),
                1.0 + 0.1 * jax.random.uniform(kv, (c,), jnp.float32))

    g1, b1, m1, v1 = bn(ks[0], ks[1], ks[2], ks[3], in_dim)
    g2, b2, m2, v2 = bn(ks[4], ks[5], ks[6], ks[7], dim)
    return {
        "w1": 0.05 * jax.random.normal(ks[8], (in_dim, in_chans, 3, 3, 3), jnp.float32),
        "bn1_gamma": g1, "bn1_beta": b1, "bn1_mean": m1, "bn1_var": v1,
        "w2": 0.05 * jax.random.normal(ks[9], (dim, in_dim, 3, 3, 3), jnp.float32),
        "bn2_gamma": g2, "bn2_beta": b2, "bn2_mean": m2, "bn2_var": v2,
    }


# ----------------------------------------------------------------------------
# Pure-JAX reference (same bf16 feed / f32 accumulate) for a sanity check
# ----------------------------------------------------------------------------
def _ref_patch_embed(params, x):
    def conv_bn_relu(x_cl, w, gamma, beta, mean, var, eps):
        s = gamma / jnp.sqrt(var + eps)
        b = beta - mean * s
        wt = (jnp.transpose(w, (2, 3, 4, 1, 0)) * s).astype(jnp.bfloat16)
        y = jax.lax.conv_general_dilated(
            x_cl.astype(jnp.bfloat16), wt, window_strides=(2, 2, 2),
            padding=((1, 1), (1, 1), (1, 1)),
            dimension_numbers=("NDHWC", "DHWIO", "NDHWC"),
            preferred_element_type=jnp.float32)
        return jnp.maximum(y + b, 0.0)

    x_cl = jnp.transpose(x, (0, 2, 3, 4, 1))
    y1 = conv_bn_relu(x_cl, params["w1"], params["bn1_gamma"], params["bn1_beta"],
                      params["bn1_mean"], params["bn1_var"], 1e-4)
    y1 = y1.astype(jnp.bfloat16)   # match the kernel's bf16 inter-layer storage
    y2 = conv_bn_relu(y1, params["w2"], params["bn2_gamma"], params["bn2_beta"],
                      params["bn2_mean"], params["bn2_var"], 1e-4)
    return jnp.transpose(y2, (0, 4, 1, 2, 3))


if __name__ == "__main__":
    key = jax.random.PRNGKey(0)
    kx, kp, kx2 = jax.random.split(key, 3)

    B, in_chans, D, H, W = 2, 2, 16, 16, 16
    in_dim, dim = 64, 96

    params = init_params(kp, in_chans=in_chans, in_dim=in_dim, dim=dim)
    x = jax.random.normal(kx, (B, in_chans, D, H, W), jnp.float32)

    fwd = jax.jit(patch_embed_3d_forward)
    out = fwd(params, x)
    jax.block_until_ready(out)
    assert out.shape == (B, dim, D // 4, H // 4, W // 4), out.shape

    ref = _ref_patch_embed(params, x)
    err = float(jnp.max(jnp.abs(out - ref)))
    assert err < 1e-2, f"max |out - ref| = {err}"

    # Odd spatial sizes: exercises the padding / im2col index arithmetic.
    x_odd = jax.random.normal(kx2, (1, in_chans, 7, 9, 11), jnp.float32)
    out_odd = fwd(params, x_odd)
    jax.block_until_ready(out_odd)
    ref_odd = _ref_patch_embed(params, x_odd)
    assert out_odd.shape == ref_odd.shape, (out_odd.shape, ref_odd.shape)
    err_odd = float(jnp.max(jnp.abs(out_odd - ref_odd)))
    assert err_odd < 1e-2, f"odd-shape max |out - ref| = {err_odd}"

    print("KERNEL_OK")
</pallas_src>

<mosaic_0001>
module attributes {stable_mosaic.version = 11 : i64} {
  func.func @_matmul_bias_relu_kernel(%arg0: i32, %arg1: memref<512x128xbf16, #tpu.memory_space<vmem>>, %arg2: memref<128x64xbf16, #tpu.memory_space<vmem>>, %arg3: memref<1x64xf32, #tpu.memory_space<vmem>>, %arg4: memref<512x64xbf16, #tpu.memory_space<vmem>>) attributes {dimension_semantics = [#tpu.dimension_semantics<parallel>], iteration_bounds = array<i64: 2>, scalar_prefetch = 0 : i64, scratch_operands = 0 : i64, tpu.core_type = #tpu.core_type<tc>, window_params = [{transform_indices = @transform_0, window_bounds = array<i64: 512, 128>}, {pipeline_mode = #tpu.pipeline_mode<synchronous>, transform_indices = @transform_1, window_bounds = array<i64: 128, 64>}, {pipeline_mode = #tpu.pipeline_mode<synchronous>, transform_indices = @transform_2, window_bounds = array<i64: 1, 64>}, {transform_indices = @transform_3, window_bounds = array<i64: 512, 64>}]} {
    %c0 = arith.constant 0 : index
    %c0_0 = arith.constant 0 : index
    %0 = vector.load %arg1[%c0, %c0_0] : memref<512x128xbf16, #tpu.memory_space<vmem>>, vector<512x128xbf16>
    %c0_1 = arith.constant 0 : index
    %c0_2 = arith.constant 0 : index
    %1 = vector.load %arg2[%c0_1, %c0_2] : memref<128x64xbf16, #tpu.memory_space<vmem>>, vector<128x64xbf16>
    %cst = arith.constant dense<0.000000e+00> : vector<512x64xf32>
    %2 = tpu.matmul %0, %1, %cst {dimension_numbers = #tpu.dot_dimension_numbers<[1], [0], [0], [1], [0, 0, 1, 1], [], []>} : vector<512x128xbf16>, vector<128x64xbf16>, vector<512x64xf32> -> vector<512x64xf32>
    %c0_3 = arith.constant 0 : index
    %c0_4 = arith.constant 0 : index
    %3 = vector.load %arg3[%c0_3, %c0_4] : memref<1x64xf32, #tpu.memory_space<vmem>>, vector<1x64xf32>
    %4 = vector.broadcast %3 : vector<1x64xf32> to vector<512x64xf32>
    %5 = arith.addf %2, %4 : vector<512x64xf32>
    %cst_5 = arith.constant 0.000000e+00 : f32
    %6 = vector.broadcast %cst_5 : f32 to vector<512x64xf32>
    %7 = arith.maximumf %5, %6 : vector<512x64xf32>
    %8 = arith.truncf %7 : vector<512x64xf32> to vector<512x64xbf16>
    %c0_6 = arith.constant 0 : index
    %c0_7 = arith.constant 0 : index
    %9 = vector.load %arg4[%c0_6, %c0_7] : memref<512x64xbf16, #tpu.memory_space<vmem>>, vector<512x64xbf16>
    tpu.vector_store %arg4[%c0_6, %c0_7], %8 {strides = array<i32>} : memref<512x64xbf16, #tpu.memory_space<vmem>>, vector<512x64xbf16>,
    return
  }
  func.func @transform_0(%arg0: i32) -> (i32, i32) {
    %c0_i32 = arith.constant 0 : i32
    %c0_i32_0 = arith.constant 0 : i32
    return %arg0, %c0_i32 : i32, i32
  }
  func.func @transform_1(%arg0: i32) -> (i32, i32) {
    %c0_i32 = arith.constant 0 : i32
    %c0_i32_0 = arith.constant 0 : i32
    %c0_i32_1 = arith.constant 0 : i32
    return %c0_i32, %c0_i32_0 : i32, i32
  }
  func.func @transform_2(%arg0: i32) -> (i32, i32) {
    %c0_i32 = arith.constant 0 : i32
    %c0_i32_0 = arith.constant 0 : i32
    %c0_i32_1 = arith.constant 0 : i32
    return %c0_i32, %c0_i32_0 : i32, i32
  }
  func.func @transform_3(%arg0: i32) -> (i32, i32) {
    %c0_i32 = arith.constant 0 : i32
    %c0_i32_0 = arith.constant 0 : i32
    return %arg0, %c0_i32 : i32, i32
  }
}

module attributes {stable_mosaic.version = 11 : i64} {
  func.func @_matmul_bias_relu_kernel(%arg0: i32, %arg1: memref<64x1792xbf16, #tpu.memory_space<vmem>>, %arg2: memref<1792x128xbf16, #tpu.memory_space<vmem>>, %arg3: memref<1x128xf32, #tpu.memory_space<vmem>>, %arg4: memref<64x128xf32, #tpu.memory_space<vmem>>) attributes {dimension_semantics = [#tpu.dimension_semantics<parallel>], iteration_bounds = array<i64: 2>, scalar_prefetch = 0 : i64, scratch_operands = 0 : i64, tpu.core_type = #tpu.core_type<tc>, window_params = [{transform_indices = @transform_0, window_bounds = array<i64: 64, 1792>}, {pipeline_mode = #tpu.pipeline_mode<synchronous>, transform_indices = @transform_1, window_bounds = array<i64: 1792, 128>}, {pipeline_mode = #tpu.pipeline_mode<synchronous>, transform_indices = @transform_2, window_bounds = array<i64: 1, 128>}, {transform_indices = @transform_3, window_bounds = array<i64: 64, 128>}]} {
    %c0 = arith.constant 0 : index
    %c0_0 = arith.constant 0 : index
    %0 = vector.load %arg1[%c0, %c0_0] : memref<64x1792xbf16, #tpu.memory_space<vmem>>, vector<64x1792xbf16>
    %c0_1 = arith.constant 0 : index
    %c0_2 = arith.constant 0 : index
    %1 = vector.load %arg2[%c0_1, %c0_2] : memref<1792x128xbf16, #tpu.memory_space<vmem>>, vector<1792x128xbf16>
    %cst = arith.constant dense<0.000000e+00> : vector<64x128xf32>
    %2 = tpu.matmul %0, %1, %cst {dimension_numbers = #tpu.dot_dimension_numbers<[1], [0], [0], [1], [0, 0, 1, 1], [], []>} : vector<64x1792xbf16>, vector<1792x128xbf16>, vector<64x128xf32> -> vector<64x128xf32>
    %c0_3 = arith.constant 0 : index
    %c0_4 = arith.constant 0 : index
    %3 = vector.load %arg3[%c0_3, %c0_4] : memref<1x128xf32, #tpu.memory_space<vmem>>, vector<1x128xf32>
    %4 = vector.broadcast %3 : vector<1x128xf32> to vector<64x128xf32>
    %5 = arith.addf %2, %4 : vector<64x128xf32>
    %cst_5 = arith.constant 0.000000e+00 : f32
    %6 = vector.broadcast %cst_5 : f32 to vector<64x128xf32>
    %7 = arith.maximumf %5, %6 : vector<64x128xf32>
    %c0_6 = arith.constant 0 : index
    %c0_7 = arith.constant 0 : index
    %8 = vector.load %arg4[%c0_6, %c0_7] : memref<64x128xf32, #tpu.memory_space<vmem>>, vector<64x128xf32>
    tpu.vector_store %arg4[%c0_6, %c0_7], %7 {strides = array<i32>} : memref<64x128xf32, #tpu.memory_space<vmem>>, vector<64x128xf32>,
    return
  }
  func.func @transform_0(%arg0: i32) -> (i32, i32) {
    %c0_i32 = arith.constant 0 : i32
    %c0_i32_0 = arith.constant 0 : i32
    return %arg0, %c0_i32 : i32, i32
  }
  func.func @transform_1(%arg0: i32) -> (i32, i32) {
    %c0_i32 = arith.constant 0 : i32
    %c0_i32_0 = arith.constant 0 : i32
    %c0_i32_1 = arith.constant 0 : i32
    return %c0_i32, %c0_i32_0 : i32, i32
  }
  func.func @transform_2(%arg0: i32) -> (i32, i32) {
    %c0_i32 = arith.constant 0 : i32
    %c0_i32_0 = arith.constant 0 : i32
    %c0_i32_1 = arith.constant 0 : i32
    return %c0_i32, %c0_i32_0 : i32, i32
  }
  func.func @transform_3(%arg0: i32) -> (i32, i32) {
    %c0_i32 = arith.constant 0 : i32
    %c0_i32_0 = arith.constant 0 : i32
    return %arg0, %c0_i32 : i32, i32
  }
}

</mosaic_0001>

<llo_original>
// kernel: patch_embed_3d_forward.2
$region0: #{patch_embed_3d_forward.2}
  #allocation0 [shape = 'u32[]', space=smem, size = 0x4, offset = 0x4, fixed_abs, tag = 'smem constant byte address 0x4 - core index']
  #allocation1 [shape = 'u32[72,128]{1,0:T(1,128)}', space=vmem, size = 0x9000, scoped, tag = 'internal scratch']
  %s0 = inlined_call_operand.vmem [shape: bf16[1024,128], index: 0, kind: input, shape index: {}]
  %s1 = inlined_call_operand.vmem [shape: bf16[128,64], index: 1, kind: input, shape index: {}]
  %s2 = inlined_call_operand.vmem [shape: f32[1,64], index: 2, kind: input, shape index: {}]
  %s3 = inlined_call_operand.vmem [shape: bf16[1024,64], index: 3, kind: output, shape index: {}]
  %s4 = sld [smem:[#allocation0]]
  $region45: #{patch_embed_3d_forward.2} parent=0
    _
  %s6 = ssub.s32 1, %s4
  %s7 = scalar_select 0, %s6, %s4
  loop: start=0, step=1, limit=4
  $region2: #{patch_embed_3d_forward.2} parent=0 // loop_pre_header
    _
  $region3: #{patch_embed_3d_forward.2} parent=0 // loop_header
    %s9 = sphi 0, %s13
    %p10 = scmp.ge.s32.totalorder %s9, 4
    %s19 = sphi 0, %s21
    %s22 = sphi 0, %s19
    %s23 = sphi 0, %s22
    %s39 = sphi 0, %s23
    %s43 = sphi 0, %s43
    %s45 = sphi 0, %s43
    %s46 = sphi 0, %s45
    %s60 = sphi 0, %s46
    %s64 = sphi 0, %s64
    %s66 = sphi 0, %s64
    %s67 = sphi 0, %s66
    %s81 = sphi 0, %s67
    %s87 = sphi 0, %s89
    %s90 = sphi 0, %s87
    %s91 = sphi 0, %s90
    %s107 = sphi 0, %s91
  $region4: #{patch_embed_3d_forward.2} parent=0 // loop_header_branch
    %12 = sbr.rel (%p10) target = $region8
  $region5: #{patch_embed_3d_forward.2} parent=0 // loop_body
    %s14 = ssub.s32 %s9, 1
    %s15 = ssub.s32 %s9, 2
    %s16 = sadd.s32 %s9, 1
    %s17 = ssub.s32 %s9, %s16
    %p18 = scmp.eq.s32.totalorder %s17, 0
    %s20 = sadd.s32 %s19, 1
    %s21 = scalar_select %p18, %s19, %s20
    %p24 = pneg %p18
    %p25 = scmp.eq.s32.totalorder %s9, 1
    %p26 = por %p24, %p25
    %p27 = scmp.ne.s32.totalorder %s19, %s22
    %p28 = scmp.eq.s32.totalorder %s9, 0
    %p29 = por %p27, %p28
    %p30 = scmp.ne.s32.totalorder %s19, %s22
    %p31 = scmp.eq.s32.totalorder %s14, 1
    %p32 = por %p30, %p31
    %p33 = scmp.ne.s32.totalorder %s22, %s23
    %p34 = scmp.eq.s32.totalorder %s14, 0
    %p35 = por %p33, %p34
    %p36 = scmp.ne.s32.totalorder %s22, %s23
    %p37 = scmp.eq.s32.totalorder %s15, 1
    %p38 = por %p36, %p37
    %p40 = scmp.ne.s32.totalorder %s23, %s39
    %p41 = scmp.eq.s32.totalorder %s15, 0
    %p42 = por %p40, %p41
    %s44 = sadd.s32 %s43, 1
    %p47 = scmp.eq.s32.totalorder %s9, 1
    %p48 = scmp.ne.s32.totalorder %s43, %s45
    %p49 = scmp.eq.s32.totalorder %s9, 0
    %p50 = por %p48, %p49
    %p51 = scmp.ne.s32.totalorder %s43, %s45
    %p52 = scmp.eq.s32.totalorder %s14, 1
    %p53 = por %p51, %p52
    %p54 = scmp.ne.s32.totalorder %s45, %s46
    %p55 = scmp.eq.s32.totalorder %s14, 0
    %p56 = por %p54, %p55
    %p57 = scmp.ne.s32.totalorder %s45, %s46
    %p58 = scmp.eq.s32.totalorder %s15, 1
    %p59 = por %p57, %p58
    %p61 = scmp.ne.s32.totalorder %s46, %s60
    %p62 = scmp.eq.s32.totalorder %s15, 0
    %p63 = por %p61, %p62
    %s65 = sadd.s32 %s64, 1
    %p68 = scmp.eq.s32.totalorder %s9, 1
    %p69 = scmp.ne.s32.totalorder %s64, %s66
    %p70 = scmp.eq.s32.totalorder %s9, 0
    %p71 = por %p69, %p70
    %p72 = scmp.ne.s32.totalorder %s64, %s66
    %p73 = scmp.eq.s32.totalorder %s14, 1
    %p74 = por %p72, %p73
    %p75 = scmp.ne.s32.totalorder %s66, %s67
    %p76 = scmp.eq.s32.totalorder %s14, 0
    %p77 = por %p75, %p76
    %p78 = scmp.ne.s32.totalorder %s66, %s67
    %p79 = scmp.eq.s32.totalorder %s15, 1
    %p80 = por %p78, %p79
    %p82 = scmp.ne.s32.totalorder %s67, %s81
    %p83 = scmp.eq.s32.totalorder %s15, 0
    %p84 = por %p82, %p83
    %s85 = ssub.s32 %s9, %s16
    %p86 = scmp.eq.s32.totalorder %s85, 0
    %s88 = sadd.s32 %s87, 1
    %s89 = scalar_select %p86, %s87, %s88
    %p92 = pneg %p86
    %p93 = scmp.eq.s32.totalorder %s9, 1
    %p94 = por %p92, %p93
    %p95 = scmp.ne.s32.totalorder %s87, %s90
    %p96 = scmp.eq.s32.totalorder %s9, 0
    %p97 = por %p95, %p96
    %p98 = scmp.ne.s32.totalorder %s87, %s90
    %p99 = scmp.eq.s32.totalorder %s14, 1
    %p100 = por %p98, %p99
    %p101 = scmp.ne.s32.totalorder %s90, %s91
    %p102 = scmp.eq.s32.totalorder %s14, 0
    %p103 = por %p101, %p102
    %p104 = scmp.ne.s32.totalorder %s90, %s91
    %p105 = scmp.eq.s32.totalorder %s15, 1
    %p106 = por %p104, %p105
    %p108 = scmp.ne.s32.totalorder %s91, %s107
    %p109 = scmp.eq.s32.totalorder %s15, 0
    %p110 = por %p108, %p109
    %p111 = scmp.le.s32.totalorder 1, %s9
    %p112 = scmp.lt.s32.totalorder %s9, 3
    %p113 = pnand %p111, %p112
    %p114 = pneg %p113
    // Predicated region
    $region9: #{patch_embed_3d_forward.2} parent=5 // pred_check
      _
    $region10: #{patch_embed_3d_forward.2} parent=5 // pred_check_branch
      %116 = sbr.rel (%p113) target = $region12
    $region11: #{patch_embed_3d_forward.2} parent=5 // pred_region
      %s117 = ssub.s32 %s9, 1
      // Predicated region
      $region13: #{patch_embed_3d_forward.2} parent=11 // pred_check
        %p118 = pneg %p56
      $region14: #{patch_embed_3d_forward.2} parent=11 // pred_check_branch
        %120 = sbr.rel (%p118) target = $region16
      $region15: #{patch_embed_3d_forward.2} parent=11 // pred_region
        _
      $region16: #{patch_embed_3d_forward.2} parent=11 // pred_fallthru
        _
      // Predicated region
      $region17: #{patch_embed_3d_forward.2} parent=11 // pred_check
        %p121 = pneg %p77
      $region18: #{patch_embed_3d_forward.2} parent=11 // pred_check_branch
        %123 = sbr.rel (%p121) target = $region20
      $region19: #{patch_embed_3d_forward.2} parent=11 // pred_region
        _
      $region20: #{patch_embed_3d_forward.2} parent=11 // pred_fallthru
        _
    $region12: #{patch_embed_3d_forward.2} parent=5 // pred_fallthru
      _
    %p124 = scmp.lt.s32.totalorder %s9, 2
    // Predicated region
    $region21: #{patch_embed_3d_forward.2} parent=5 // pred_check
      %p125 = pneg %p124
    $region22: #{patch_embed_3d_forward.2} parent=5 // pred_check_branch
      %127 = sbr.rel (%p125) target = $region24
    $region23: #{patch_embed_3d_forward.2} parent=5 // pred_region
      // Predicated region
      $region25: #{patch_embed_3d_forward.2} parent=23 // pred_check
        %p128 = pneg %p29
      $region26: #{patch_embed_3d_forward.2} parent=23 // pred_check_branch
        %130 = sbr.rel (%p128) target = $region28
      $region27: #{patch_embed_3d_forward.2} parent=23 // pred_region
        %s131 = smul.u32 64, %s9
        %p132 = scmp.lt.s32.totalorder %s131, 127
        %s133 = scalar_select %p132, %s131, 127
        %s134 = smul.addr %s133, 4
        %s135 = scalar_lea.vmem %s0, %s134
        %s136 = smul.u32 64, %s9
      $region28: #{patch_embed_3d_forward.2} parent=23 // pred_fallthru
        _
    $region24: #{patch_embed_3d_forward.2} parent=5 // pred_fallthru
      _
    %p137 = scmp.le.s32.totalorder 1, %s9
    %p138 = scmp.lt.s32.totalorder %s9, 3
    %p139 = pnand %p137, %p138
    %p140 = pneg %p139
    // Predicated region
    $region29: #{patch_embed_3d_forward.2} parent=5 // pred_check
      _
    $region30: #{patch_embed_3d_forward.2} parent=5 // pred_check_branch
      %142 = sbr.rel (%p139) target = $region32
    $region31: #{patch_embed_3d_forward.2} parent=5 // pred_region
      %s143 = ssub.s32 %s9, 1
      %s144 = smul.u32 64, %s14
      %p145 = scmp.lt.s32.totalorder %s144, 127
      %s146 = scalar_select %p145, %s144, 127
      %s147 = smul.addr %s146, 4
      %s148 = scalar_lea.vmem %s0, %s147
      %p149 = pneg %p35
      %p150 = pneg %p32
      %p151 = pneg %p56
      %p152 = pneg %p53
      %p153 = pneg %p77
      %p154 = pneg %p74
      %p155 = pneg %p103
      %p156 = pneg %p100
      %s157 = smul.u32 64, %s14
      %p158 = scmp.lt.s32.totalorder %s157, 127
      %s159 = scalar_select %p158, %s157, 127
      %s160 = smul.addr %s159, 4
      %s161 = scalar_lea.vmem %s3, %s160
      %s162 = smul.u32 64, %s14
      %p163 = scmp.lt.s32.totalorder %s162, 127
      %s164 = scalar_select %p163, %s162, 127
      %s165 = smul.addr %s164, 4
      %s166 = scalar_lea.vmem %s0, %s165
      %s167 = smul.u32 64, %s14
      %s168 = smul.u32 64, %s14
      %p169 = scmp.lt.s32.totalorder %s168, 127
      %s170 = scalar_select %p169, %s168, 127
      %s171 = smul.addr %s170, 4
      %s172 = scalar_lea.vmem %s3, %s171
      %s173 = smul.u32 64, %s14
      %v174 = vld [vmem:[%s166] sm:$0xf]
      %v175 = vld [vmem:[%s166 + $0x4] sm:$0xf]
      %v176 = vld [vmem:[%s166 + $0x8] sm:$0xf]
      %v177 = vld [vmem:[%s166 + $0xc] sm:$0xf]
      %v178 = vld [vmem:[%s166 + $0x10] sm:$0xf]
      %v179 = vld [vmem:[%s166 + $0x14] sm:$0xf]
      %v180 = vld [vmem:[%s166 + $0x18] sm:$0xf]
      %v181 = vld [vmem:[%s166 + $0x1c] sm:$0xf]
      %v182 = vld [vmem:[%s166 + $0x20] sm:$0xf]
      %v183 = vld [vmem:[%s166 + $0x24] sm:$0xf]
      %v184 = vld [vmem:[%s166 + $0x28] sm:$0xf]
      %v185 = vld [vmem:[%s166 + $0x2c] sm:$0xf]
      %v186 = vld [vmem:[%s166 + $0x30] sm:$0xf]
      %v187 = vld [vmem:[%s166 + $0x34] sm:$0xf]
      %v188 = vld [vmem:[%s166 + $0x38] sm:$0xf]
      %v189 = vld [vmem:[%s166 + $0x3c] sm:$0xf]
      %v190 = vld [vmem:[%s166 + $0x40] sm:$0xf]
      %v191 = vld [vmem:[%s166 + $0x44] sm:$0xf]
      %v192 = vld [vmem:[%s166 + $0x48] sm:$0xf]
      %v193 = vld [vmem:[%s166 + $0x4c] sm:$0xf]
      %v194 = vld [vmem:[%s166 + $0x50] sm:$0xf]
      %v195 = vld [vmem:[%s166 + $0x54] sm:$0xf]
      %v196 = vld [vmem:[%s166 + $0x58] sm:$0xf]
      %v197 = vld [vmem:[%s166 + $0x5c] sm:$0xf]
      %v198 = vld [vmem:[%s166 + $0x60] sm:$0xf]
      %v199 = vld [vmem:[%s166 + $0x64] sm:$0xf]
      %v200 = vld [vmem:[%s166 + $0x68] sm:$0xf]
      %v201 = vld [vmem:[%s166 + $0x6c] sm:$0xf]
      %v202 = vld [vmem:[%s166 + $0x70] sm:$0xf]
      %v203 = vld [vmem:[%s166 + $0x74] sm:$0xf]
      %v204 = vld [vmem:[%s166 + $0x78] sm:$0xf]
      %v205 = vld [vmem:[%s166 + $0x7c] sm:$0xf]
      %v206 = vld [vmem:[%s166 + $0x80] sm:$0xf]
      %v207 = vld [vmem:[%s166 + $0x84] sm:$0xf]
      %v208 = vld [vmem:[%s166 + $0x88] sm:$0xf]
      %v209 = vld [vmem:[%s166 + $0x8c] sm:$0xf]
      %v210 = vld [vmem:[%s166 + $0x90] sm:$0xf]
      %v211 = vld [vmem:[%s166 + $0x94] sm:$0xf]
      %v212 = vld [vmem:[%s166 + $0x98] sm:$0xf]
      %v213 = vld [vmem:[%s166 + $0x9c] sm:$0xf]
      %v214 = vld [vmem:[%s166 + $0xa0] sm:$0xf]
      %v215 = vld [vmem:[%s166 + $0xa4] sm:$0xf]
      %v216 = vld [vmem:[%s166 + $0xa8] sm:$0xf]
      %v217 = vld [vmem:[%s166 + $0xac] sm:$0xf]
      %v218 = vld [vmem:[%s166 + $0xb0] sm:$0xf]
      %v219 = vld [vmem:[%s166 + $0xb4] sm:$0xf]
      %v220 = vld [vmem:[%s166 + $0xb8] sm:$0xf]
      %v221 = vld [vmem:[%s166 + $0xbc] sm:$0xf]
      %v222 = vld [vmem:[%s166 + $0xc0] sm:$0xf]
      %v223 = vld [vmem:[%s166 + $0xc4] sm:$0xf]
      %v224 = vld [vmem:[%s166 + $0xc8] sm:$0xf]
      %v225 = vld [vmem:[%s166 + $0xcc] sm:$0xf]
      %v226 = vld [vmem:[%s166 + $0xd0] sm:$0xf]
      %v227 = vld [vmem:[%s166 + $0xd4] sm:$0xf]
      %v228 = vld [vmem:[%s166 + $0xd8] sm:$0xf]
      %v229 = vld [vmem:[%s166 + $0xdc] sm:$0xf]
      %v230 = vld [vmem:[%s166 + $0xe0] sm:$0xf]
      %v231 = vld [vmem:[%s166 + $0xe4] sm:$0xf]
      %v232 = vld [vmem:[%s166 + $0xe8] sm:$0xf]
      %v233 = vld [vmem:[%s166 + $0xec] sm:$0xf]
      %v234 = vld [vmem:[%s166 + $0xf0] sm:$0xf]
      %v235 = vld [vmem:[%s166 + $0xf4] sm:$0xf]
      %v236 = vld [vmem:[%s166 + $0xf8] sm:$0xf]
      %v237 = vld [vmem:[%s166 + $0xfc] sm:$0xf]
      %v238 = vld [vmem:[%s1] sm:$0xf]
      %v239 = vld [vmem:[%s1 + $0x4] sm:$0xf]
      %v240 = vld [vmem:[%s1 + $0x8] sm:$0xf]
      %v241 = vld [vmem:[%s1 + $0xc] sm:$0xf]
      %v242 = vld [vmem:[%s1 + $0x10] sm:$0xf]
      %v243 = vld [vmem:[%s1 + $0x14] sm:$0xf]
      %v244 = vld [vmem:[%s1 + $0x18] sm:$0xf]
      %v245 = vld [vmem:[%s1 + $0x1c] sm:$0xf]
      %v246 = vld [vmem:[%s1 + $0x20] sm:$0xf]
      %v247 = vld [vmem:[%s1 + $0x24] sm:$0xf]
      %v248 = vld [vmem:[%s1 + $0x28] sm:$0xf]
      %v249 = vld [vmem:[%s1 + $0x2c] sm:$0xf]
      %v250 = vld [vmem:[%s1 + $0x30] sm:$0xf]
      %v251 = vld [vmem:[%s1 + $0x34] sm:$0xf]
      %v252 = vld [vmem:[%s1 + $0x38] sm:$0xf]
      %v253 = vld [vmem:[%s1 + $0x3c] sm:$0xf]
      %v254 = vld [vmem:[%s2] sm:$0x1]
      %v256 = vperm.slane %v254, 0
      %v322 = vunpack.c.l.b16 %v174
      %v323 = vunpack.c.l.b16 %v175
      %v324 = vunpack.c.l.b16 %v176
      %v325 = vunpack.c.l.b16 %v177
      %v326 = vunpack.c.l.b16 %v178
      %v327 = vunpack.c.l.b16 %v179
      %v328 = vunpack.c.l.b16 %v180
      %v329 = vunpack.c.l.b16 %v181
      %v330 = vunpack.c.l.b16 %v182
      %v331 = vunpack.c.l.b16 %v183
      %v332 = vunpack.c.l.b16 %v184
      %v333 = vunpack.c.l.b16 %v185
      %v334 = vunpack.c.l.b16 %v186
      %v335 = vunpack.c.l.b16 %v187
      %v336 = vunpack.c.l.b16 %v188
      %v337 = vunpack.c.l.b16 %v189
      %v338 = vunpack.c.l.b16 %v190
      %v339 = vunpack.c.l.b16 %v191
      %v340 = vunpack.c.l.b16 %v192
      %v341 = vunpack.c.l.b16 %v193
      %v342 = vunpack.c.l.b16 %v194
      %v343 = vunpack.c.l.b16 %v195
      %v344 = vunpack.c.l.b16 %v196
      %v345 = vunpack.c.l.b16 %v197
      %v346 = vunpack.c.l.b16 %v198
      %v347 = vunpack.c.l.b16 %v199
      %v348 = vunpack.c.l.b16 %v200
      %v349 = vunpack.c.l.b16 %v201
      %v350 = vunpack.c.l.b16 %v202
      %v351 = vunpack.c.l.b16 %v203
      %v352 = vunpack.c.l.b16 %v204
      %v353 = vunpack.c.l.b16 %v205
      %v354 = vunpack.c.l.b16 %v206
      %v355 = vunpack.c.l.b16 %v207
      %v356 = vunpack.c.l.b16 %v208
      %v357 = vunpack.c.l.b16 %v209
      %v358 = vunpack.c.l.b16 %v210
      %v359 = vunpack.c.l.b16 %v211
      %v360 = vunpack.c.l.b16 %v212
      %v361 = vunpack.c.l.b16 %v213
      %v362 = vunpack.c.l.b16 %v214
      %v363 = vunpack.c.l.b16 %v215
      %v364 = vunpack.c.l.b16 %v216
      %v365 = vunpack.c.l.b16 %v217
      %v366 = vunpack.c.l.b16 %v218
      %v367 = vunpack.c.l.b16 %v219
      %v368 = vunpack.c.l.b16 %v220
      %v369 = vunpack.c.l.b16 %v221
      %v370 = vunpack.c.l.b16 %v222
      %v371 = vunpack.c.l.b16 %v223
      %v372 = vunpack.c.l.b16 %v224
      %v373 = vunpack.c.l.b16 %v225
      %v374 = vunpack.c.l.b16 %v226
      %v375 = vunpack.c.l.b16 %v227
      %v376 = vunpack.c.l.b16 %v228
      %v377 = vunpack.c.l.b16 %v229
      %v378 = vunpack.c.l.b16 %v230
      %v379 = vunpack.c.l.b16 %v231
      %v380 = vunpack.c.l.b16 %v232
      %v381 = vunpack.c.l.b16 %v233
      %v382 = vunpack.c.l.b16 %v234
      %v383 = vunpack.c.l.b16 %v235
      %v384 = vunpack.c.l.b16 %v236
      %v385 = vunpack.c.l.b16 %v237
      %v386 = vpack.c.b16 %v323, %v322
      %v387 = vpack.c.b16 %v325, %v324
      %v388 = vpack.c.b16 %v327, %v326
      %v389 = vpack.c.b16 %v329, %v328
      %v390 = vpack.c.b16 %v331, %v330
      %v391 = vpack.c.b16 %v333, %v332
      %v392 = vpack.c.b16 %v335, %v334
      %v393 = vpack.c.b16 %v337, %v336
      %v394 = vpack.c.b16 %v339, %v338
      %v395 = vpack.c.b16 %v341, %v340
      %v396 = vpack.c.b16 %v343, %v342
      %v397 = vpack.c.b16 %v345, %v344
      %v398 = vpack.c.b16 %v347, %v346
      %v399 = vpack.c.b16 %v349, %v348
      %v400 = vpack.c.b16 %v351, %v350
      %v401 = vpack.c.b16 %v353, %v352
      %v402 = vpack.c.b16 %v355, %v354
      %v403 = vpack.c.b16 %v357, %v356
      %v404 = vpack.c.b16 %v359, %v358
      %v405 = vpack.c.b16 %v361, %v360
      %v406 = vpack.c.b16 %v363, %v362
      %v407 = vpack.c.b16 %v365, %v364
      %v408 = vpack.c.b16 %v367, %v366
      %v409 = vpack.c.b16 %v369, %v368
      %v410 = vpack.c.b16 %v371, %v370
      %v411 = vpack.c.b16 %v373, %v372
      %v412 = vpack.c.b16 %v375, %v374
      %v413 = vpack.c.b16 %v377, %v376
      %v414 = vpack.c.b16 %v379, %v378
      %v415 = vpack.c.b16 %v381, %v380
      %v416 = vpack.c.b16 %v383, %v382
      %v417 = vpack.c.b16 %v385, %v384
      %v466 = vunpack.c.l.b16 %v238
      %v467 = vunpack.c.l.b16 %v239
      %v468 = vunpack.c.l.b16 %v240
      %v469 = vunpack.c.l.b16 %v241
      %v470 = vunpack.c.l.b16 %v242
      %v471 = vunpack.c.l.b16 %v243
      %v472 = vunpack.c.l.b16 %v244
      %v473 = vunpack.c.l.b16 %v245
      %v474 = vunpack.c.l.b16 %v246
      %v475 = vunpack.c.l.b16 %v247
      %v476 = vunpack.c.l.b16 %v248
      %v477 = vunpack.c.l.b16 %v249
      %v478 = vunpack.c.l.b16 %v250
      %v479 = vunpack.c.l.b16 %v251
      %v480 = vunpack.c.l.b16 %v252
      %v481 = vunpack.c.l.b16 %v253
      %v482 = vpack.c.b16 %v467, %v466
      %v483 = vpack.c.b16 %v469, %v468
      %v484 = vpack.c.b16 %v471, %v470
      %v485 = vpack.c.b16 %v473, %v472
      %v486 = vpack.c.b16 %v475, %v474
      %v487 = vpack.c.b16 %v477, %v476
      %v488 = vpack.c.b16 %v479, %v478
      %v489 = vpack.c.b16 %v481, %v480
      %498 = vmatpush.bf16.msra.mxu0 %v489
      %499 = vmatpush.bf16.msra.mxu0 %v488
      %500 = vmatpush.bf16.msra.mxu0 %v487
      %501 = vmatpush.bf16.msra.mxu0 %v486
      %502 = vmatpush.bf16.msra.mxu0 %v485
      %503 = vmatpush.bf16.msra.mxu0 %v484
      %504 = vmatpush.bf16.msra.mxu0 %v483
      %505 = vmatpush.bf16.msra.mxu0 %v482
      %506 = vmatmul.bf16.gmra.mxu0 %v386
      %v507 = vpop.f32.mrf.mxu0
      %v508 = vadd.f32 %v256, %v507
      %v509 = vpop.f32.mrf.mxu0
      %v510 = vadd.f32 %v256, %v509
      %511 = vmatmul.bf16.gmra.mxu0 %v387
      %v512 = vpop.f32.mrf.mxu0
      %v513 = vadd.f32 %v256, %v512
      %v514 = vpop.f32.mrf.mxu0
      %v515 = vadd.f32 %v256, %v514
      %516 = vmatmul.bf16.gmra.mxu0 %v388
      %v517 = vpop.f32.mrf.mxu0
      %v518 = vadd.f32 %v256, %v517
      %v519 = vpop.f32.mrf.mxu0
      %v520 = vadd.f32 %v256, %v519
      %521 = vmatmul.bf16.gmra.mxu0 %v389
      %v522 = vpop.f32.mrf.mxu0
      %v523 = vadd.f32 %v256, %v522
      %v524 = vpop.f32.mrf.mxu0
      %v525 = vadd.f32 %v256, %v524
      %526 = vmatmul.bf16.gmra.mxu0 %v390
      %v527 = vpop.f32.mrf.mxu0
      %v528 = vadd.f32 %v256, %v527
      %v529 = vpop.f32.mrf.mxu0
      %v530 = vadd.f32 %v256, %v529
      %531 = vmatmul.bf16.gmra.mxu0 %v391
      %v532 = vpop.f32.mrf.mxu0
      %v533 = vadd.f32 %v256, %v532
      %v534 = vpop.f32.mrf.mxu0
      %v535 = vadd.f32 %v256, %v534
      %536 = vmatmul.bf16.gmra.mxu0 %v392
      %v537 = vpop.f32.mrf.mxu0
      %v538 = vadd.f32 %v256, %v537
      %v539 = vpop.f32.mrf.mxu0
      %v540 = vadd.f32 %v256, %v539
      %541 = vmatmul.bf16.gmra.mxu0 %v393
      %v542 = vpop.f32.mrf.mxu0
      %v543 = vadd.f32 %v256, %v542
      %v544 = vpop.f32.mrf.mxu0
      %v545 = vadd.f32 %v256, %v544
      %546 = vmatmul.bf16.gmra.mxu0 %v394
      %v547 = vpop.f32.mrf.mxu0
      %v548 = vadd.f32 %v256, %v547
      %v549 = vpop.f32.mrf.mxu0
      %v550 = vadd.f32 %v256, %v549
      %551 = vmatmul.bf16.gmra.mxu0 %v395
      %v552 = vpop.f32.mrf.mxu0
      %v553 = vadd.f32 %v256, %v552
      %v554 = vpop.f32.mrf.mxu0
      %v555 = vadd.f32 %v256, %v554
      %556 = vmatmul.bf16.gmra.mxu0 %v396
      %v557 = vpop.f32.mrf.mxu0
      %v558 = vadd.f32 %v256, %v557
      %v559 = vpop.f32.mrf.mxu0
      %v560 = vadd.f32 %v256, %v559
      %561 = vmatmul.bf16.gmra.mxu0 %v397
      %v562 = vpop.f32.mrf.mxu0
      %v563 = vadd.f32 %v256, %v562
      %v564 = vpop.f32.mrf.mxu0
      %v565 = vadd.f32 %v256, %v564
      %566 = vmatmul.bf16.gmra.mxu0 %v398
      %v567 = vpop.f32.mrf.mxu0
      %v568 = vadd.f32 %v256, %v567
      %v569 = vpop.f32.mrf.mxu0
      %v570 = vadd.f32 %v256, %v569
      %571 = vmatmul.bf16.gmra.mxu0 %v399
      %v572 = vpop.f32.mrf.mxu0
      %v573 = vadd.f32 %v256, %v572
      %v574 = vpop.f32.mrf.mxu0
      %v575 = vadd.f32 %v256, %v574
      %576 = vmatmul.bf16.gmra.mxu0 %v400
      %v577 = vpop.f32.mrf.mxu0
      %v578 = vadd.f32 %v256, %v577
      %v579 = vpop.f32.mrf.mxu0
      %v580 = vadd.f32 %v256, %v579
      %581 = vmatmul.bf16.gmra.mxu0 %v401
      %v582 = vpop.f32.mrf.mxu0
      %v583 = vadd.f32 %v256, %v582
      %v584 = vpop.f32.mrf.mxu0
      %v585 = vadd.f32 %v256, %v584
      %586 = vmatmul.bf16.gmra.mxu0 %v402
      %v587 = vpop.f32.mrf.mxu0
      %v588 = vadd.f32 %v256, %v587
      %v589 = vpop.f32.mrf.mxu0
      %v590 = vadd.f32 %v256, %v589
      %591 = vmatmul.bf16.gmra.mxu0 %v403
      %v592 = vpop.f32.mrf.mxu0
      %v593 = vadd.f32 %v256, %v592
      %v594 = vpop.f32.mrf.mxu0
      %v595 = vadd.f32 %v256, %v594
      %596 = vmatmul.bf16.gmra.mxu0 %v404
      %v597 = vpop.f32.mrf.mxu0
      %v598 = vadd.f32 %v256, %v597
      %v599 = vpop.f32.mrf.mxu0
      %v600 = vadd.f32 %v256, %v599
      %601 = vmatmul.bf16.gmra.mxu0 %v405
      %v602 = vpop.f32.mrf.mxu0
      %v603 = vadd.f32 %v256, %v602
      %v604 = vpop.f32.mrf.mxu0
      %v605 = vadd.f32 %v256, %v604
      %606 = vmatmul.bf16.gmra.mxu0 %v406
      %v607 = vpop.f32.mrf.mxu0
      %v608 = vadd.f32 %v256, %v607
      %v609 = vpop.f32.mrf.mxu0
      %v610 = vadd.f32 %v256, %v609
      %611 = vmatmul.bf16.gmra.mxu0 %v407
      %v612 = vpop.f32.mrf.mxu0
      %v613 = vadd.f32 %v256, %v612
      %v614 = vpop.f32.mrf.mxu0
      %v615 = vadd.f32 %v256, %v614
      %616 = vmatmul.bf16.gmra.mxu0 %v408
      %v617 = vpop.f32.mrf.mxu0
      %v618 = vadd.f32 %v256, %v617
      %v619 = vpop.f32.mrf.mxu0
      %v620 = vadd.f32 %v256, %v619
      %621 = vmatmul.bf16.gmra.mxu0 %v409
      %v622 = vpop.f32.mrf.mxu0
      %v623 = vadd.f32 %v256, %v622
      %v624 = vpop.f32.mrf.mxu0
      %v625 = vadd.f32 %v256, %v624
      %626 = vmatmul.bf16.gmra.mxu0 %v410
      %v627 = vpop.f32.mrf.mxu0
      %v628 = vadd.f32 %v256, %v627
      %v629 = vpop.f32.mrf.mxu0
      %v630 = vadd.f32 %v256, %v629
      %631 = vmatmul.bf16.gmra.mxu0 %v411
      %v632 = vpop.f32.mrf.mxu0
      %v633 = vadd.f32 %v256, %v632
      %v634 = vpop.f32.mrf.mxu0
      %v635 = vadd.f32 %v256, %v634
      %636 = vmatmul.bf16.gmra.mxu0 %v412
      %v637 = vpop.f32.mrf.mxu0
      %v638 = vadd.f32 %v256, %v637
      %v639 = vpop.f32.mrf.mxu0
      %v640 = vadd.f32 %v256, %v639
      %641 = vmatmul.bf16.gmra.mxu0 %v413
      %v642 = vpop.f32.mrf.mxu0
      %v643 = vadd.f32 %v256, %v642
      %v644 = vpop.f32.mrf.mxu0
      %v645 = vadd.f32 %v256, %v644
      %646 = vmatmul.bf16.gmra.mxu0 %v414
      %v647 = vpop.f32.mrf.mxu0
      %v648 = vadd.f32 %v256, %v647
      %v649 = vpop.f32.mrf.mxu0
      %v650 = vadd.f32 %v256, %v649
      %651 = vmatmul.bf16.gmra.mxu0 %v415
      %v652 = vpop.f32.mrf.mxu0
      %v653 = vadd.f32 %v256, %v652
      %v654 = vpop.f32.mrf.mxu0
      %v655 = vadd.f32 %v256, %v654
      %656 = vmatmul.bf16.gmra.mxu0 %v416
      %v657 = vpop.f32.mrf.mxu0
      %v658 = vadd.f32 %v256, %v657
      %v659 = vpop.f32.mrf.mxu0
      %v660 = vadd.f32 %v256, %v659
      %661 = vmatmul.bf16.gmra.mxu0 %v417
      %v662 = vpop.f32.mrf.mxu0
      %v663 = vadd.f32 %v256, %v662
      %v664 = vpop.f32.mrf.mxu0
      %v665 = vadd.f32 %v256, %v664
      %666 = vdwg.mxu0
      %v667 = vmax.f32 %v508, 0.0
      %v668 = vmax.f32 %v510, 0.0
      %v669 = vmax.f32 %v513, 0.0
      %v670 = vmax.f32 %v515, 0.0
      %v671 = vmax.f32 %v518, 0.0
      %v672 = vmax.f32 %v520, 0.0
      %v673 = vmax.f32 %v523, 0.0
      %v674 = vmax.f32 %v525, 0.0
      %v675 = vmax.f32 %v528, 0.0
      %v676 = vmax.f32 %v530, 0.0
      %v677 = vmax.f32 %v533, 0.0
      %v678 = vmax.f32 %v535, 0.0
      %v679 = vmax.f32 %v538, 0.0
      %v680 = vmax.f32 %v540, 0.0
      %v681 = vmax.f32 %v543, 0.0
      %v682 = vmax.f32 %v545, 0.0
      %v683 = vmax.f32 %v548, 0.0
      %v684 = vmax.f32 %v550, 0.0
      %v685 = vmax.f32 %v553, 0.0
      %v686 = vmax.f32 %v555, 0.0
      %v687 = vmax.f32 %v558, 0.0
      %v688 = vmax.f32 %v560, 0.0
      %v689 = vmax.f32 %v563, 0.0
      %v690 = vmax.f32 %v565, 0.0
      %v691 = vmax.f32 %v568, 0.0
      %v692 = vmax.f32 %v570, 0.0
      %v693 = vmax.f32 %v573, 0.0
      %v694 = vmax.f32 %v575, 0.0
      %v695 = vmax.f32 %v578, 0.0
      %v696 = vmax.f32 %v580, 0.0
      %v697 = vmax.f32 %v583, 0.0
      %v698 = vmax.f32 %v585, 0.0
      %v699 = vmax.f32 %v588, 0.0
      %v700 = vmax.f32 %v590, 0.0
      %v701 = vmax.f32 %v593, 0.0
      %v702 = vmax.f32 %v595, 0.0
      %v703 = vmax.f32 %v598, 0.0
      %v704 = vmax.f32 %v600, 0.0
      %v705 = vmax.f32 %v603, 0.0
      %v706 = vmax.f32 %v605, 0.0
      %v707 = vmax.f32 %v608, 0.0
      %v708 = vmax.f32 %v610, 0.0
      %v709 = vmax.f32 %v613, 0.0
      %v710 = vmax.f32 %v615, 0.0
      %v711 = vmax.f32 %v618, 0.0
      %v712 = vmax.f32 %v620, 0.0
      %v713 = vmax.f32 %v623, 0.0
      %v714 = vmax.f32 %v625, 0.0
      %v715 = vmax.f32 %v628, 0.0
      %v716 = vmax.f32 %v630, 0.0
      %v717 = vmax.f32 %v633, 0.0
      %v718 = vmax.f32 %v635, 0.0
      %v719 = vmax.f32 %v638, 0.0
      %v720 = vmax.f32 %v640, 0.0
      %v721 = vmax.f32 %v643, 0.0
      %v722 = vmax.f32 %v645, 0.0
      %v723 = vmax.f32 %v648, 0.0
      %v724 = vmax.f32 %v650, 0.0
      %v725 = vmax.f32 %v653, 0.0
      %v726 = vmax.f32 %v655, 0.0
      %v727 = vmax.f32 %v658, 0.0
      %v728 = vmax.f32 %v660, 0.0
      %v729 = vmax.f32 %v663, 0.0
      %v730 = vmax.f32 %v665, 0.0
      %v731 = vpack.c.bf16 %v667, %v667
      %v732 = vpack.c.bf16 %v668, %v668
      %v733 = vpack.c.bf16 %v669, %v669
      %v734 = vpack.c.bf16 %v670, %v670
      %v735 = vpack.c.bf16 %v671, %v671
      %v736 = vpack.c.bf16 %v672, %v672
      %v737 = vpack.c.bf16 %v673, %v673
      %v738 = vpack.c.bf16 %v674, %v674
      %v739 = vpack.c.bf16 %v675, %v675
      %v740 = vpack.c.bf16 %v676, %v676
      %v741 = vpack.c.bf16 %v677, %v677
      %v742 = vpack.c.bf16 %v678, %v678
      %v743 = vpack.c.bf16 %v679, %v679
      %v744 = vpack.c.bf16 %v680, %v680
      %v745 = vpack.c.bf16 %v681, %v681
      %v746 = vpack.c.bf16 %v682, %v682
      %v747 = vpack.c.bf16 %v683, %v683
      %v748 = vpack.c.bf16 %v684, %v684
      %v749 = vpack.c.bf16 %v685, %v685
      %v750 = vpack.c.bf16 %v686, %v686
      %v751 = vpack.c.bf16 %v687, %v687
      %v752 = vpack.c.bf16 %v688, %v688
      %v753 = vpack.c.bf16 %v689, %v689
      %v754 = vpack.c.bf16 %v690, %v690
      %v755 = vpack.c.bf16 %v691, %v691
      %v756 = vpack.c.bf16 %v692, %v692
      %v757 = vpack.c.bf16 %v693, %v693
      %v758 = vpack.c.bf16 %v694, %v694
      %v759 = vpack.c.bf16 %v695, %v695
      %v760 = vpack.c.bf16 %v696, %v696
      %v761 = vpack.c.bf16 %v697, %v697
      %v762 = vpack.c.bf16 %v698, %v698
      %v763 = vpack.c.bf16 %v699, %v699
      %v764 = vpack.c.bf16 %v700, %v700
      %v765 = vpack.c.bf16 %v701, %v701
      %v766 = vpack.c.bf16 %v702, %v702
      %v767 = vpack.c.bf16 %v703, %v703
      %v768 = vpack.c.bf16 %v704, %v704
      %v769 = vpack.c.bf16 %v705, %v705
      %v770 = vpack.c.bf16 %v706, %v706
      %v771 = vpack.c.bf16 %v707, %v707
      %v772 = vpack.c.bf16 %v708, %v708
      %v773 = vpack.c.bf16 %v709, %v709
      %v774 = vpack.c.bf16 %v710, %v710
      %v775 = vpack.c.bf16 %v711, %v711
      %v776 = vpack.c.bf16 %v712, %v712
      %v777 = vpack.c.bf16 %v713, %v713
      %v778 = vpack.c.bf16 %v714, %v714
      %v779 = vpack.c.bf16 %v715, %v715
      %v780 = vpack.c.bf16 %v716, %v716
      %v781 = vpack.c.bf16 %v717, %v717
      %v782 = vpack.c.bf16 %v718, %v718
      %v783 = vpack.c.bf16 %v719, %v719
      %v784 = vpack.c.bf16 %v720, %v720
      %v785 = vpack.c.bf16 %v721, %v721
      %v786 = vpack.c.bf16 %v722, %v722
      %v787 = vpack.c.bf16 %v723, %v723
      %v788 = vpack.c.bf16 %v724, %v724
      %v789 = vpack.c.bf16 %v725, %v725
      %v790 = vpack.c.bf16 %v726, %v726
      %v791 = vpack.c.bf16 %v727, %v727
      %v792 = vpack.c.bf16 %v728, %v728
      %v793 = vpack.c.bf16 %v729, %v729
      %v794 = vpack.c.bf16 %v730, %v730
      %vm795 = vcmask 519168
      %796 = vst.msk [vmem:[%s172] sm:$0xf] %vm795, %v731
      %797 = vst.msk [vmem:[%s172 + $0x4] sm:$0xf] %vm795, %v732
      %798 = vst.msk [vmem:[%s172 + $0x8] sm:$0xf] %vm795, %v733
      %799 = vst.msk [vmem:[%s172 + $0xc] sm:$0xf] %vm795, %v734
      %800 = vst.msk [vmem:[%s172 + $0x10] sm:$0xf] %vm795, %v735
      %801 = vst.msk [vmem:[%s172 + $0x14] sm:$0xf] %vm795, %v736
      %802 = vst.msk [vmem:[%s172 + $0x18] sm:$0xf] %vm795, %v737
      %803 = vst.msk [vmem:[%s172 + $0x1c] sm:$0xf] %vm795, %v738
      %804 = vst.msk [vmem:[%s172 + $0x20] sm:$0xf] %vm795, %v739
      %805 = vst.msk [vmem:[%s172 + $0x24] sm:$0xf] %vm795, %v740
      %806 = vst.msk [vmem:[%s172 + $0x28] sm:$0xf] %vm795, %v741
      %807 = vst.msk [vmem:[%s172 + $0x2c] sm:$0xf] %vm795, %v742
      %808 = vst.msk [vmem:[%s172 + $0x30] sm:$0xf] %vm795, %v743
      %809 = vst.msk [vmem:[%s172 + $0x34] sm:$0xf] %vm795, %v744
      %810 = vst.msk [vmem:[%s172 + $0x38] sm:$0xf] %vm795, %v745
      %811 = vst.msk [vmem:[%s172 + $0x3c] sm:$0xf] %vm795, %v746
      %812 = vst.msk [vmem:[%s172 + $0x40] sm:$0xf] %vm795, %v747
      %813 = vst.msk [vmem:[%s172 + $0x44] sm:$0xf] %vm795, %v748
      %814 = vst.msk [vmem:[%s172 + $0x48] sm:$0xf] %vm795, %v749
      %815 = vst.msk [vmem:[%s172 + $0x4c] sm:$0xf] %vm795, %v750
      %816 = vst.msk [vmem:[%s172 + $0x50] sm:$0xf] %vm795, %v751
      %817 = vst.msk [vmem:[%s172 + $0x54] sm:$0xf] %vm795, %v752
      %818 = vst.msk [vmem:[%s172 + $0x58] sm:$0xf] %vm795, %v753
      %819 = vst.msk [vmem:[%s172 + $0x5c] sm:$0xf] %vm795, %v754
      %820 = vst.msk [vmem:[%s172 + $0x60] sm:$0xf] %vm795, %v755
      %821 = vst.msk [vmem:[%s172 + $0x64] sm:$0xf] %vm795, %v756
      %822 = vst.msk [vmem:[%s172 + $0x68] sm:$0xf] %vm795, %v757
      %823 = vst.msk [vmem:[%s172 + $0x6c] sm:$0xf] %vm795, %v758
      %824 = vst.msk [vmem:[%s172 + $0x70] sm:$0xf] %vm795, %v759
      %825 = vst.msk [vmem:[%s172 + $0x74] sm:$0xf] %vm795, %v760
      %826 = vst.msk [vmem:[%s172 + $0x78] sm:$0xf] %vm795, %v761
      %827 = vst.msk [vmem:[%s172 + $0x7c] sm:$0xf] %vm795, %v762
      %828 = vst.msk [vmem:[%s172 + $0x80] sm:$0xf] %vm795, %v763
      %829 = vst.msk [vmem:[%s172 + $0x84] sm:$0xf] %vm795, %v764
      %830 = vst.msk [vmem:[%s172 + $0x88] sm:$0xf] %vm795, %v765
      %831 = vst.msk [vmem:[%s172 + $0x8c] sm:$0xf] %vm795, %v766
      %832 = vst.msk [vmem:[%s172 + $0x90] sm:$0xf] %vm795, %v767
      %833 = vst.msk [vmem:[%s172 + $0x94] sm:$0xf] %vm795, %v768
      %834 = vst.msk [vmem:[%s172 + $0x98] sm:$0xf] %vm795, %v769
      %835 = vst.msk [vmem:[%s172 + $0x9c] sm:$0xf] %vm795, %v770
      %836 = vst.msk [vmem:[%s172 + $0xa0] sm:$0xf] %vm795, %v771
      %837 = vst.msk [vmem:[%s172 + $0xa4] sm:$0xf] %vm795, %v772
      %838 = vst.msk [vmem:[%s172 + $0xa8] sm:$0xf] %vm795, %v773
      %839 = vst.msk [vmem:[%s172 + $0xac] sm:$0xf] %vm795, %v774
      %840 = vst.msk [vmem:[%s172 + $0xb0] sm:$0xf] %vm795, %v775
      %841 = vst.msk [vmem:[%s172 + $0xb4] sm:$0xf] %vm795, %v776
      %842 = vst.msk [vmem:[%s172 + $0xb8] sm:$0xf] %vm795, %v777
      %843 = vst.msk [vmem:[%s172 + $0xbc] sm:$0xf] %vm795, %v778
      %844 = vst.msk [vmem:[%s172 + $0xc0] sm:$0xf] %vm795, %v779
      %845 = vst.msk [vmem:[%s172 + $0xc4] sm:$0xf] %vm795, %v780
      %846 = vst.msk [vmem:[%s172 + $0xc8] sm:$0xf] %vm795, %v781
      %847 = vst.msk [vmem:[%s172 + $0xcc] sm:$0xf] %vm795, %v782
      %848 = vst.msk [vmem:[%s172 + $0xd0] sm:$0xf] %vm795, %v783
      %849 = vst.msk [vmem:[%s172 + $0xd4] sm:$0xf] %vm795, %v784
      %850 = vst.msk [vmem:[%s172 + $0xd8] sm:$0xf] %vm795, %v785
      %851 = vst.msk [vmem:[%s172 + $0xdc] sm:$0xf] %vm795, %v786
      %852 = vst.msk [vmem:[%s172 + $0xe0] sm:$0xf] %vm795, %v787
      %853 = vst.msk [vmem:[%s172 + $0xe4] sm:$0xf] %vm795, %v788
      %854 = vst.msk [vmem:[%s172 + $0xe8] sm:$0xf] %vm795, %v789
      %855 = vst.msk [vmem:[%s172 + $0xec] sm:$0xf] %vm795, %v790
      %856 = vst.msk [vmem:[%s172 + $0xf0] sm:$0xf] %vm795, %v791
      %857 = vst.msk [vmem:[%s172 + $0xf4] sm:$0xf] %vm795, %v792
      %858 = vst.msk [vmem:[%s172 + $0xf8] sm:$0xf] %vm795, %v793
      %859 = vst.msk [vmem:[%s172 + $0xfc] sm:$0xf] %vm795, %v794
      %s860 = smul.u32 64, %s14
      %p861 = scmp.lt.s32.totalorder %s860, 127
      %s862 = scalar_select %p861, %s860, 127
      %s863 = smul.addr %s862, 4
      %s864 = scalar_lea.vmem %s3, %s863
      // Predicated region
      $region33: #{patch_embed_3d_forward.2} parent=31 // pred_check
        %p865 = pneg %p100
      $region34: #{patch_embed_3d_forward.2} parent=31 // pred_check_branch
        %867 = sbr.rel (%p865) target = $region36
      $region35: #{patch_embed_3d_forward.2} parent=31 // pred_region
        %s868 = smul.u32 64, %s14
      $region36: #{patch_embed_3d_forward.2} parent=31 // pred_fallthru
        _
    $region32: #{patch_embed_3d_forward.2} parent=5 // pred_fallthru
      _
    %p869 = scmp.le.s32.totalorder 2, %s9
    // Predicated region
    $region37: #{patch_embed_3d_forward.2} parent=5 // pred_check
      %p870 = pneg %p869
    $region38: #{patch_embed_3d_forward.2} parent=5 // pred_check_branch
      %872 = sbr.rel (%p870) target = $region40
    $region39: #{patch_embed_3d_forward.2} parent=5 // pred_region
      %s873 = ssub.s32 %s9, 2
      // Predicated region
      $region41: #{patch_embed_3d_forward.2} parent=39 // pred_check
        %p874 = pneg %p106
      $region42: #{patch_embed_3d_forward.2} parent=39 // pred_check_branch
        %876 = sbr.rel (%p874) target = $region44
      $region43: #{patch_embed_3d_forward.2} parent=39 // pred_region
        %s877 = smul.u32 64, %s15
        %p878 = scmp.lt.s32.totalorder %s877, 127
        %s879 = scalar_select %p878, %s877, 127
        %s880 = smul.addr %s879, 4
        %s881 = scalar_lea.vmem %s3, %s880
      $region44: #{patch_embed_3d_forward.2} parent=39 // pred_fallthru
        _
    $region40: #{patch_embed_3d_forward.2} parent=5 // pred_fallthru
      _
  $region6: #{patch_embed_3d_forward.2} parent=0 // loop_footer
    %s13 = sadd.s32 1, %s9
  $region7: #{patch_embed_3d_forward.2} parent=0 // loop_footer_branch
    %8 = sbr.rel target = $region3
  $region8: #{patch_embed_3d_forward.2} parent=0 // loop_exit
    _

// kernel: patch_embed_3d_forward.3
$region0: #{patch_embed_3d_forward.3}
  #allocation0 [shape = 'u32[]', space=smem, size = 0x4, offset = 0x4, fixed_abs, tag = 'smem constant byte address 0x4 - core index']
  #allocation1 [shape = 'u32[72,128]{1,0:T(1,128)}', space=vmem, size = 0x9000, scoped, tag = 'internal scratch']
  %s0 = inlined_call_operand.vmem [shape: bf16[128,1792], index: 0, kind: input, shape index: {}]
  %s1 = inlined_call_operand.vmem [shape: bf16[1792,128], index: 1, kind: input, shape index: {}]
  %s2 = inlined_call_operand.vmem [shape: f32[1,128], index: 2, kind: input, shape index: {}]
  %s3 = inlined_call_operand.vmem [shape: f32[128,128], index: 3, kind: output, shape index: {}]
  %s4 = sld [smem:[#allocation0]]
  $region45: #{patch_embed_3d_forward.3} parent=0
    _
  %s6 = ssub.s32 1, %s4
  %s7 = scalar_select 0, %s6, %s4
  loop: start=0, step=1, limit=4
  $region2: #{patch_embed_3d_forward.3} parent=0 // loop_pre_header
    _
  $region3: #{patch_embed_3d_forward.3} parent=0 // loop_header
    %s9 = sphi 0, %s13
    %p10 = scmp.ge.s32.totalorder %s9, 4
    %s19 = sphi 0, %s21
    %s22 = sphi 0, %s19
    %s23 = sphi 0, %s22
    %s39 = sphi 0, %s23
    %s43 = sphi 0, %s43
    %s45 = sphi 0, %s43
    %s46 = sphi 0, %s45
    %s60 = sphi 0, %s46
    %s64 = sphi 0, %s64
    %s66 = sphi 0, %s64
    %s67 = sphi 0, %s66
    %s81 = sphi 0, %s67
    %s87 = sphi 0, %s89
    %s90 = sphi 0, %s87
    %s91 = sphi 0, %s90
    %s107 = sphi 0, %s91
  $region4: #{patch_embed_3d_forward.3} parent=0 // loop_header_branch
    %12 = sbr.rel (%p10) target = $region8
  $region5: #{patch_embed_3d_forward.3} parent=0 // loop_body
    %s14 = ssub.s32 %s9, 1
    %s15 = ssub.s32 %s9, 2
    %s16 = sadd.s32 %s9, 1
    %s17 = ssub.s32 %s9, %s16
    %p18 = scmp.eq.s32.totalorder %s17, 0
    %s20 = sadd.s32 %s19, 1
    %s21 = scalar_select %p18, %s19, %s20
    %p24 = pneg %p18
    %p25 = scmp.eq.s32.totalorder %s9, 1
    %p26 = por %p24, %p25
    %p27 = scmp.ne.s32.totalorder %s19, %s22
    %p28 = scmp.eq.s32.totalorder %s9, 0
    %p29 = por %p27, %p28
    %p30 = scmp.ne.s32.totalorder %s19, %s22
    %p31 = scmp.eq.s32.totalorder %s14, 1
    %p32 = por %p30, %p31
    %p33 = scmp.ne.s32.totalorder %s22, %s23
    %p34 = scmp.eq.s32.totalorder %s14, 0
    %p35 = por %p33, %p34
    %p36 = scmp.ne.s32.totalorder %s22, %s23
    %p37 = scmp.eq.s32.totalorder %s15, 1
    %p38 = por %p36, %p37
    %p40 = scmp.ne.s32.totalorder %s23, %s39
    %p41 = scmp.eq.s32.totalorder %s15, 0
    %p42 = por %p40, %p41
    %s44 = sadd.s32 %s43, 1
    %p47 = scmp.eq.s32.totalorder %s9, 1
    %p48 = scmp.ne.s32.totalorder %s43, %s45
    %p49 = scmp.eq.s32.totalorder %s9, 0
    %p50 = por %p48, %p49
    %p51 = scmp.ne.s32.totalorder %s43, %s45
    %p52 = scmp.eq.s32.totalorder %s14, 1
    %p53 = por %p51, %p52
    %p54 = scmp.ne.s32.totalorder %s45, %s46
    %p55 = scmp.eq.s32.totalorder %s14, 0
    %p56 = por %p54, %p55
    %p57 = scmp.ne.s32.totalorder %s45, %s46
    %p58 = scmp.eq.s32.totalorder %s15, 1
    %p59 = por %p57, %p58
    %p61 = scmp.ne.s32.totalorder %s46, %s60
    %p62 = scmp.eq.s32.totalorder %s15, 0
    %p63 = por %p61, %p62
    %s65 = sadd.s32 %s64, 1
    %p68 = scmp.eq.s32.totalorder %s9, 1
    %p69 = scmp.ne.s32.totalorder %s64, %s66
    %p70 = scmp.eq.s32.totalorder %s9, 0
    %p71 = por %p69, %p70
    %p72 = scmp.ne.s32.totalorder %s64, %s66
    %p73 = scmp.eq.s32.totalorder %s14, 1
    %p74 = por %p72, %p73
    %p75 = scmp.ne.s32.totalorder %s66, %s67
    %p76 = scmp.eq.s32.totalorder %s14, 0
    %p77 = por %p75, %p76
    %p78 = scmp.ne.s32.totalorder %s66, %s67
    %p79 = scmp.eq.s32.totalorder %s15, 1
    %p80 = por %p78, %p79
    %p82 = scmp.ne.s32.totalorder %s67, %s81
    %p83 = scmp.eq.s32.totalorder %s15, 0
    %p84 = por %p82, %p83
    %s85 = ssub.s32 %s9, %s16
    %p86 = scmp.eq.s32.totalorder %s85, 0
    %s88 = sadd.s32 %s87, 1
    %s89 = scalar_select %p86, %s87, %s88
    %p92 = pneg %p86
    %p93 = scmp.eq.s32.totalorder %s9, 1
    %p94 = por %p92, %p93
    %p95 = scmp.ne.s32.totalorder %s87, %s90
    %p96 = scmp.eq.s32.totalorder %s9, 0
    %p97 = por %p95, %p96
    %p98 = scmp.ne.s32.totalorder %s87, %s90
    %p99 = scmp.eq.s32.totalorder %s14, 1
    %p100 = por %p98, %p99
    %p101 = scmp.ne.s32.totalorder %s90, %s91
    %p102 = scmp.eq.s32.totalorder %s14, 0
    %p103 = por %p101, %p102
    %p104 = scmp.ne.s32.totalorder %s90, %s91
    %p105 = scmp.eq.s32.totalorder %s15, 1
    %p106 = por %p104, %p105
    %p108 = scmp.ne.s32.totalorder %s91, %s107
    %p109 = scmp.eq.s32.totalorder %s15, 0
    %p110 = por %p108, %p109
    %p111 = scmp.le.s32.totalorder 1, %s9
    %p112 = scmp.lt.s32.totalorder %s9, 3
    %p113 = pnand %p111, %p112
    %p114 = pneg %p113
    // Predicated region
    $region9: #{patch_embed_3d_forward.3} parent=5 // pred_check
      _
    $region10: #{patch_embed_3d_forward.3} parent=5 // pred_check_branch
      %116 = sbr.rel (%p113) target = $region12
    $region11: #{patch_embed_3d_forward.3} parent=5 // pred_region
      %s117 = ssub.s32 %s9, 1
      // Predicated region
      $region13: #{patch_embed_3d_forward.3} parent=11 // pred_check
        %p118 = pneg %p56
      $region14: #{patch_embed_3d_forward.3} parent=11 // pred_check_branch
        %120 = sbr.rel (%p118) target = $region16
      $region15: #{patch_embed_3d_forward.3} parent=11 // pred_region
        _
      $region16: #{patch_embed_3d_forward.3} parent=11 // pred_fallthru
        _
      // Predicated region
      $region17: #{patch_embed_3d_forward.3} parent=11 // pred_check
        %p121 = pneg %p77
      $region18: #{patch_embed_3d_forward.3} parent=11 // pred_check_branch
        %123 = sbr.rel (%p121) target = $region20
      $region19: #{patch_embed_3d_forward.3} parent=11 // pred_region
        _
      $region20: #{patch_embed_3d_forward.3} parent=11 // pred_fallthru
        _
    $region12: #{patch_embed_3d_forward.3} parent=5 // pred_fallthru
      _
    %p124 = scmp.lt.s32.totalorder %s9, 2
    // Predicated region
    $region21: #{patch_embed_3d_forward.3} parent=5 // pred_check
      %p125 = pneg %p124
    $region22: #{patch_embed_3d_forward.3} parent=5 // pred_check_branch
      %127 = sbr.rel (%p125) target = $region24
    $region23: #{patch_embed_3d_forward.3} parent=5 // pred_region
      // Predicated region
      $region25: #{patch_embed_3d_forward.3} parent=23 // pred_check
        %p128 = pneg %p29
      $region26: #{patch_embed_3d_forward.3} parent=23 // pred_check_branch
        %130 = sbr.rel (%p128) target = $region28
      $region27: #{patch_embed_3d_forward.3} parent=23 // pred_region
        %s131 = smul.u32 8, %s9
        %p132 = scmp.lt.s32.totalorder %s131, 15
        %s133 = scalar_select %p132, %s131, 15
        %s134 = smul.addr %s133, 14
        %s135 = smul.addr %s134, 4
        %s136 = scalar_lea.vmem %s0, %s135
        %s137 = smul.u32 8, %s9
      $region28: #{patch_embed_3d_forward.3} parent=23 // pred_fallthru
        _
    $region24: #{patch_embed_3d_forward.3} parent=5 // pred_fallthru
      _
    %p138 = scmp.le.s32.totalorder 1, %s9
    %p139 = scmp.lt.s32.totalorder %s9, 3
    %p140 = pnand %p138, %p139
    %p141 = pneg %p140
    // Predicated region
    $region29: #{patch_embed_3d_forward.3} parent=5 // pred_check
      _
    $region30: #{patch_embed_3d_forward.3} parent=5 // pred_check_branch
      %143 = sbr.rel (%p140) target = $region32
    $region31: #{patch_embed_3d_forward.3} parent=5 // pred_region
      %s144 = ssub.s32 %s9, 1
      %s145 = smul.u32 8, %s14
      %p146 = scmp.lt.s32.totalorder %s145, 15
      %s147 = scalar_select %p146, %s145, 15
      %s148 = smul.addr %s147, 14
      %s149 = smul.addr %s148, 4
      %s150 = scalar_lea.vmem %s0, %s149
      %p151 = pneg %p35
      %p152 = pneg %p32
      %p153 = pneg %p56
      %p154 = pneg %p53
      %p155 = pneg %p77
      %p156 = pneg %p74
      %p157 = pneg %p103
      %p158 = pneg %p100
      %s159 = smul.u32 8, %s14
      %p160 = scmp.lt.s32.totalorder %s159, 15
      %s161 = scalar_select %p160, %s159, 15
      %s162 = smul.addr %s161, 8
      %s163 = scalar_lea.vmem %s3, %s162
      %s164 = smul.u32 8, %s14
      %p165 = scmp.lt.s32.totalorder %s164, 15
      %s166 = scalar_select %p165, %s164, 15
      %s167 = smul.addr %s166, 14
      %s168 = smul.addr %s167, 4
      %s169 = scalar_lea.vmem %s0, %s168
      %s170 = smul.u32 8, %s14
      %s171 = smul.u32 8, %s14
      %p172 = scmp.lt.s32.totalorder %s171, 15
      %s173 = scalar_select %p172, %s171, 15
      %s174 = smul.addr %s173, 8
      %s175 = scalar_lea.vmem %s3, %s174
      %s176 = smul.u32 8, %s14
      %v177 = vld [vmem:[%s169] sm:$0xff]
      %v178 = vld [vmem:[%s169 + $0x8] sm:$0xff]
      %v179 = vld [vmem:[%s169 + $0x10] sm:$0xff]
      %v180 = vld [vmem:[%s169 + $0x18] sm:$0xff]
      %v181 = vld [vmem:[%s169 + $0x20] sm:$0xff]
      %v182 = vld [vmem:[%s169 + $0x28] sm:$0xff]
      %v183 = vld [vmem:[%s169 + $0x30] sm:$0xff]
      %v184 = vld [vmem:[%s169 + $0x38] sm:$0xff]
      %v185 = vld [vmem:[%s169 + $0x40] sm:$0xff]
      %v186 = vld [vmem:[%s169 + $0x48] sm:$0xff]
      %v187 = vld [vmem:[%s169 + $0x50] sm:$0xff]
      %v188 = vld [vmem:[%s169 + $0x58] sm:$0xff]
      %v189 = vld [vmem:[%s169 + $0x60] sm:$0xff]
      %v190 = vld [vmem:[%s169 + $0x68] sm:$0xff]
      %v191 = vld [vmem:[%s169 + $0x70] sm:$0xff]
      %v192 = vld [vmem:[%s169 + $0x78] sm:$0xff]
      %v193 = vld [vmem:[%s169 + $0x80] sm:$0xff]
      %v194 = vld [vmem:[%s169 + $0x88] sm:$0xff]
      %v195 = vld [vmem:[%s169 + $0x90] sm:$0xff]
      %v196 = vld [vmem:[%s169 + $0x98] sm:$0xff]
      %v197 = vld [vmem:[%s169 + $0xa0] sm:$0xff]
      %v198 = vld [vmem:[%s169 + $0xa8] sm:$0xff]
      %v199 = vld [vmem:[%s169 + $0xb0] sm:$0xff]
      %v200 = vld [vmem:[%s169 + $0xb8] sm:$0xff]
      %v201 = vld [vmem:[%s169 + $0xc0] sm:$0xff]
      %v202 = vld [vmem:[%s169 + $0xc8] sm:$0xff]
      %v203 = vld [vmem:[%s169 + $0xd0] sm:$0xff]
      %v204 = vld [vmem:[%s169 + $0xd8] sm:$0xff]
      %v205 = vld [vmem:[%s169 + $0xe0] sm:$0xff]
      %v206 = vld [vmem:[%s169 + $0xe8] sm:$0xff]
      %v207 = vld [vmem:[%s169 + $0xf0] sm:$0xff]
      %v208 = vld [vmem:[%s169 + $0xf8] sm:$0xff]
      %v209 = vld [vmem:[%s169 + $0x100] sm:$0xff]
      %v210 = vld [vmem:[%s169 + $0x108] sm:$0xff]
      %v211 = vld [vmem:[%s169 + $0x110] sm:$0xff]
      %v212 = vld [vmem:[%s169 + $0x118] sm:$0xff]
      %v213 = vld [vmem:[%s169 + $0x120] sm:$0xff]
      %v214 = vld [vmem:[%s169 + $0x128] sm:$0xff]
      %v215 = vld [vmem:[%s169 + $0x130] sm:$0xff]
      %v216 = vld [vmem:[%s169 + $0x138] sm:$0xff]
      %v217 = vld [vmem:[%s169 + $0x140] sm:$0xff]
      %v218 = vld [vmem:[%s169 + $0x148] sm:$0xff]
      %v219 = vld [vmem:[%s169 + $0x150] sm:$0xff]
      %v220 = vld [vmem:[%s169 + $0x158] sm:$0xff]
      %v221 = vld [vmem:[%s169 + $0x160] sm:$0xff]
      %v222 = vld [vmem:[%s169 + $0x168] sm:$0xff]
      %v223 = vld [vmem:[%s169 + $0x170] sm:$0xff]
      %v224 = vld [vmem:[%s169 + $0x178] sm:$0xff]
      %v225 = vld [vmem:[%s169 + $0x180] sm:$0xff]
      %v226 = vld [vmem:[%s169 + $0x188] sm:$0xff]
      %v227 = vld [vmem:[%s169 + $0x190] sm:$0xff]
      %v228 = vld [vmem:[%s169 + $0x198] sm:$0xff]
      %v229 = vld [vmem:[%s169 + $0x1a0] sm:$0xff]
      %v230 = vld [vmem:[%s169 + $0x1a8] sm:$0xff]
      %v231 = vld [vmem:[%s169 + $0x1b0] sm:$0xff]
      %v232 = vld [vmem:[%s169 + $0x1b8] sm:$0xff]
      %v233 = vld [vmem:[%s1] sm:$0xf]
      %v234 = vld [vmem:[%s1 + $0x4] sm:$0xf]
      %v235 = vld [vmem:[%s1 + $0x8] sm:$0xf]
      %v236 = vld [vmem:[%s1 + $0xc] sm:$0xf]
      %v237 = vld [vmem:[%s1 + $0x10] sm:$0xf]
      %v238 = vld [vmem:[%s1 + $0x14] sm:$0xf]
      %v239 = vld [vmem:[%s1 + $0x18] sm:$0xf]
      %v240 = vld [vmem:[%s1 + $0x1c] sm:$0xf]
      %v241 = vld [vmem:[%s1 + $0x20] sm:$0xf]
      %v242 = vld [vmem:[%s1 + $0x24] sm:$0xf]
      %v243 = vld [vmem:[%s1 + $0x28] sm:$0xf]
      %v244 = vld [vmem:[%s1 + $0x2c] sm:$0xf]
      %v245 = vld [vmem:[%s1 + $0x30] sm:$0xf]
      %v246 = vld [vmem:[%s1 + $0x34] sm:$0xf]
      %v247 = vld [vmem:[%s1 + $0x38] sm:$0xf]
      %v248 = vld [vmem:[%s1 + $0x3c] sm:$0xf]
      %v249 = vld [vmem:[%s1 + $0x40] sm:$0xf]
      %v250 = vld [vmem:[%s1 + $0x44] sm:$0xf]
      %v251 = vld [vmem:[%s1 + $0x48] sm:$0xf]
      %v252 = vld [vmem:[%s1 + $0x4c] sm:$0xf]
      %v253 = vld [vmem:[%s1 + $0x50] sm:$0xf]
      %v254 = vld [vmem:[%s1 + $0x54] sm:$0xf]
      %v255 = vld [vmem:[%s1 + $0x58] sm:$0xf]
      %v256 = vld [vmem:[%s1 + $0x5c] sm:$0xf]
      %v257 = vld [vmem:[%s1 + $0x60] sm:$0xf]
      %v258 = vld [vmem:[%s1 + $0x64] sm:$0xf]
      %v259 = vld [vmem:[%s1 + $0x68] sm:$0xf]
      %v260 = vld [vmem:[%s1 + $0x6c] sm:$0xf]
      %v261 = vld [vmem:[%s1 + $0x70] sm:$0xf]
      %v262 = vld [vmem:[%s1 + $0x74] sm:$0xf]
      %v263 = vld [vmem:[%s1 + $0x78] sm:$0xf]
      %v264 = vld [vmem:[%s1 + $0x7c] sm:$0xf]
      %v265 = vld [vmem:[%s1 + $0x80] sm:$0xf]
      %v266 = vld [vmem:[%s1 + $0x84] sm:$0xf]
      %v267 = vld [vmem:[%s1 + $0x88] sm:$0xf]
      %v268 = vld [vmem:[%s1 + $0x8c] sm:$0xf]
      %v269 = vld [vmem:[%s1 + $0x90] sm:$0xf]
      %v270 = vld [vmem:[%s1 + $0x94] sm:$0xf]
      %v271 = vld [vmem:[%s1 + $0x98] sm:$0xf]
      %v272 = vld [vmem:[%s1 + $0x9c] sm:$0xf]
      %v273 = vld [vmem:[%s1 + $0xa0] sm:$0xf]
      %v274 = vld [vmem:[%s1 + $0xa4] sm:$0xf]
      %v275 = vld [vmem:[%s1 + $0xa8] sm:$0xf]
      %v276 = vld [vmem:[%s1 + $0xac] sm:$0xf]
      %v277 = vld [vmem:[%s1 + $0xb0] sm:$0xf]
      %v278 = vld [vmem:[%s1 + $0xb4] sm:$0xf]
      %v279 = vld [vmem:[%s1 + $0xb8] sm:$0xf]
      %v280 = vld [vmem:[%s1 + $0xbc] sm:$0xf]
      %v281 = vld [vmem:[%s1 + $0xc0] sm:$0xf]
      %v282 = vld [vmem:[%s1 + $0xc4] sm:$0xf]
      %v283 = vld [vmem:[%s1 + $0xc8] sm:$0xf]
      %v284 = vld [vmem:[%s1 + $0xcc] sm:$0xf]
      %v285 = vld [vmem:[%s1 + $0xd0] sm:$0xf]
      %v286 = vld [vmem:[%s1 + $0xd4] sm:$0xf]
      %v287 = vld [vmem:[%s1 + $0xd8] sm:$0xf]
      %v288 = vld [vmem:[%s1 + $0xdc] sm:$0xf]
      %v289 = vld [vmem:[%s1 + $0xe0] sm:$0xf]
      %v290 = vld [vmem:[%s1 + $0xe4] sm:$0xf]
      %v291 = vld [vmem:[%s1 + $0xe8] sm:$0xf]
      %v292 = vld [vmem:[%s1 + $0xec] sm:$0xf]
      %v293 = vld [vmem:[%s1 + $0xf0] sm:$0xf]
      %v294 = vld [vmem:[%s1 + $0xf4] sm:$0xf]
      %v295 = vld [vmem:[%s1 + $0xf8] sm:$0xf]
      %v296 = vld [vmem:[%s1 + $0xfc] sm:$0xf]
      %v297 = vld [vmem:[%s1 + $0x100] sm:$0xf]
      %v298 = vld [vmem:[%s1 + $0x104] sm:$0xf]
      %v299 = vld [vmem:[%s1 + $0x108] sm:$0xf]
      %v300 = vld [vmem:[%s1 + $0x10c] sm:$0xf]
      %v301 = vld [vmem:[%s1 + $0x110] sm:$0xf]
      %v302 = vld [vmem:[%s1 + $0x114] sm:$0xf]
      %v303 = vld [vmem:[%s1 + $0x118] sm:$0xf]
      %v304 = vld [vmem:[%s1 + $0x11c] sm:$0xf]
      %v305 = vld [vmem:[%s1 + $0x120] sm:$0xf]
      %v306 = vld [vmem:[%s1 + $0x124] sm:$0xf]
      %v307 = vld [vmem:[%s1 + $0x128] sm:$0xf]
      %v308 = vld [vmem:[%s1 + $0x12c] sm:$0xf]
      %v309 = vld [vmem:[%s1 + $0x130] sm:$0xf]
      %v310 = vld [vmem:[%s1 + $0x134] sm:$0xf]
      %v311 = vld [vmem:[%s1 + $0x138] sm:$0xf]
      %v312 = vld [vmem:[%s1 + $0x13c] sm:$0xf]
      %v313 = vld [vmem:[%s1 + $0x140] sm:$0xf]
      %v314 = vld [vmem:[%s1 + $0x144] sm:$0xf]
      %v315 = vld [vmem:[%s1 + $0x148] sm:$0xf]
      %v316 = vld [vmem:[%s1 + $0x14c] sm:$0xf]
      %v317 = vld [vmem:[%s1 + $0x150] sm:$0xf]
      %v318 = vld [vmem:[%s1 + $0x154] sm:$0xf]
      %v319 = vld [vmem:[%s1 + $0x158] sm:$0xf]
      %v320 = vld [vmem:[%s1 + $0x15c] sm:$0xf]
      %v321 = vld [vmem:[%s1 + $0x160] sm:$0xf]
      %v322 = vld [vmem:[%s1 + $0x164] sm:$0xf]
      %v323 = vld [vmem:[%s1 + $0x168] sm:$0xf]
      %v324 = vld [vmem:[%s1 + $0x16c] sm:$0xf]
      %v325 = vld [vmem:[%s1 + $0x170] sm:$0xf]
      %v326 = vld [vmem:[%s1 + $0x174] sm:$0xf]
      %v327 = vld [vmem:[%s1 + $0x178] sm:$0xf]
      %v328 = vld [vmem:[%s1 + $0x17c] sm:$0xf]
      %v329 = vld [vmem:[%s1 + $0x180] sm:$0xf]
      %v330 = vld [vmem:[%s1 + $0x184] sm:$0xf]
      %v331 = vld [vmem:[%s1 + $0x188] sm:$0xf]
      %v332 = vld [vmem:[%s1 + $0x18c] sm:$0xf]
      %v333 = vld [vmem:[%s1 + $0x190] sm:$0xf]
      %v334 = vld [vmem:[%s1 + $0x194] sm:$0xf]
      %v335 = vld [vmem:[%s1 + $0x198] sm:$0xf]
      %v336 = vld [vmem:[%s1 + $0x19c] sm:$0xf]
      %v337 = vld [vmem:[%s1 + $0x1a0] sm:$0xf]
      %v338 = vld [vmem:[%s1 + $0x1a4] sm:$0xf]
      %v339 = vld [vmem:[%s1 + $0x1a8] sm:$0xf]
      %v340 = vld [vmem:[%s1 + $0x1ac] sm:$0xf]
      %v341 = vld [vmem:[%s1 + $0x1b0] sm:$0xf]
      %v342 = vld [vmem:[%s1 + $0x1b4] sm:$0xf]
      %v343 = vld [vmem:[%s1 + $0x1b8] sm:$0xf]
      %v344 = vld [vmem:[%s1 + $0x1bc] sm:$0xf]
      %v345 = vld [vmem:[%s1 + $0x1c0] sm:$0xf]
      %v346 = vld [vmem:[%s1 + $0x1c4] sm:$0xf]
      %v347 = vld [vmem:[%s1 + $0x1c8] sm:$0xf]
      %v348 = vld [vmem:[%s1 + $0x1cc] sm:$0xf]
      %v349 = vld [vmem:[%s1 + $0x1d0] sm:$0xf]
      %v350 = vld [vmem:[%s1 + $0x1d4] sm:$0xf]
      %v351 = vld [vmem:[%s1 + $0x1d8] sm:$0xf]
      %v352 = vld [vmem:[%s1 + $0x1dc] sm:$0xf]
      %v353 = vld [vmem:[%s1 + $0x1e0] sm:$0xf]
      %v354 = vld [vmem:[%s1 + $0x1e4] sm:$0xf]
      %v355 = vld [vmem:[%s1 + $0x1e8] sm:$0xf]
      %v356 = vld [vmem:[%s1 + $0x1ec] sm:$0xf]
      %v357 = vld [vmem:[%s1 + $0x1f0] sm:$0xf]
      %v358 = vld [vmem:[%s1 + $0x1f4] sm:$0xf]
      %v359 = vld [vmem:[%s1 + $0x1f8] sm:$0xf]
      %v360 = vld [vmem:[%s1 + $0x1fc] sm:$0xf]
      %v361 = vld [vmem:[%s1 + $0x200] sm:$0xf]
      %v362 = vld [vmem:[%s1 + $0x204] sm:$0xf]
      %v363 = vld [vmem:[%s1 + $0x208] sm:$0xf]
      %v364 = vld [vmem:[%s1 + $0x20c] sm:$0xf]
      %v365 = vld [vmem:[%s1 + $0x210] sm:$0xf]
      %v366 = vld [vmem:[%s1 + $0x214] sm:$0xf]
      %v367 = vld [vmem:[%s1 + $0x218] sm:$0xf]
      %v368 = vld [vmem:[%s1 + $0x21c] sm:$0xf]
      %v369 = vld [vmem:[%s1 + $0x220] sm:$0xf]
      %v370 = vld [vmem:[%s1 + $0x224] sm:$0xf]
      %v371 = vld [vmem:[%s1 + $0x228] sm:$0xf]
      %v372 = vld [vmem:[%s1 + $0x22c] sm:$0xf]
      %v373 = vld [vmem:[%s1 + $0x230] sm:$0xf]
      %v374 = vld [vmem:[%s1 + $0x234] sm:$0xf]
      %v375 = vld [vmem:[%s1 + $0x238] sm:$0xf]
      %v376 = vld [vmem:[%s1 + $0x23c] sm:$0xf]
      %v377 = vld [vmem:[%s1 + $0x240] sm:$0xf]
      %v378 = vld [vmem:[%s1 + $0x244] sm:$0xf]
      %v379 = vld [vmem:[%s1 + $0x248] sm:$0xf]
      %v380 = vld [vmem:[%s1 + $0x24c] sm:$0xf]
      %v381 = vld [vmem:[%s1 + $0x250] sm:$0xf]
      %v382 = vld [vmem:[%s1 + $0x254] sm:$0xf]
      %v383 = vld [vmem:[%s1 + $0x258] sm:$0xf]
      %v384 = vld [vmem:[%s1 + $0x25c] sm:$0xf]
      %v385 = vld [vmem:[%s1 + $0x260] sm:$0xf]
      %v386 = vld [vmem:[%s1 + $0x264] sm:$0xf]
      %v387 = vld [vmem:[%s1 + $0x268] sm:$0xf]
      %v388 = vld [vmem:[%s1 + $0x26c] sm:$0xf]
      %v389 = vld [vmem:[%s1 + $0x270] sm:$0xf]
      %v390 = vld [vmem:[%s1 + $0x274] sm:$0xf]
      %v391 = vld [vmem:[%s1 + $0x278] sm:$0xf]
      %v392 = vld [vmem:[%s1 + $0x27c] sm:$0xf]
      %v393 = vld [vmem:[%s1 + $0x280] sm:$0xf]
      %v394 = vld [vmem:[%s1 + $0x284] sm:$0xf]
      %v395 = vld [vmem:[%s1 + $0x288] sm:$0xf]
      %v396 = vld [vmem:[%s1 + $0x28c] sm:$0xf]
      %v397 = vld [vmem:[%s1 + $0x290] sm:$0xf]
      %v398 = vld [vmem:[%s1 + $0x294] sm:$0xf]
      %v399 = vld [vmem:[%s1 + $0x298] sm:$0xf]
      %v400 = vld [vmem:[%s1 + $0x29c] sm:$0xf]
      %v401 = vld [vmem:[%s1 + $0x2a0] sm:$0xf]
      %v402 = vld [vmem:[%s1 + $0x2a4] sm:$0xf]
      %v403 = vld [vmem:[%s1 + $0x2a8] sm:$0xf]
      %v404 = vld [vmem:[%s1 + $0x2ac] sm:$0xf]
      %v405 = vld [vmem:[%s1 + $0x2b0] sm:$0xf]
      %v406 = vld [vmem:[%s1 + $0x2b4] sm:$0xf]
      %v407 = vld [vmem:[%s1 + $0x2b8] sm:$0xf]
      %v408 = vld [vmem:[%s1 + $0x2bc] sm:$0xf]
      %v409 = vld [vmem:[%s1 + $0x2c0] sm:$0xf]
      %v410 = vld [vmem:[%s1 + $0x2c4] sm:$0xf]
      %v411 = vld [vmem:[%s1 + $0x2c8] sm:$0xf]
      %v412 = vld [vmem:[%s1 + $0x2cc] sm:$0xf]
      %v413 = vld [vmem:[%s1 + $0x2d0] sm:$0xf]
      %v414 = vld [vmem:[%s1 + $0x2d4] sm:$0xf]
      %v415 = vld [vmem:[%s1 + $0x2d8] sm:$0xf]
      %v416 = vld [vmem:[%s1 + $0x2dc] sm:$0xf]
      %v417 = vld [vmem:[%s1 + $0x2e0] sm:$0xf]
      %v418 = vld [vmem:[%s1 + $0x2e4] sm:$0xf]
      %v419 = vld [vmem:[%s1 + $0x2e8] sm:$0xf]
      %v420 = vld [vmem:[%s1 + $0x2ec] sm:$0xf]
      %v421 = vld [vmem:[%s1 + $0x2f0] sm:$0xf]
      %v422 = vld [vmem:[%s1 + $0x2f4] sm:$0xf]
      %v423 = vld [vmem:[%s1 + $0x2f8] sm:$0xf]
      %v424 = vld [vmem:[%s1 + $0x2fc] sm:$0xf]
      %v425 = vld [vmem:[%s1 + $0x300] sm:$0xf]
      %v426 = vld [vmem:[%s1 + $0x304] sm:$0xf]
      %v427 = vld [vmem:[%s1 + $0x308] sm:$0xf]
      %v428 = vld [vmem:[%s1 + $0x30c] sm:$0xf]
      %v429 = vld [vmem:[%s1 + $0x310] sm:$0xf]
      %v430 = vld [vmem:[%s1 + $0x314] sm:$0xf]
      %v431 = vld [vmem:[%s1 + $0x318] sm:$0xf]
      %v432 = vld [vmem:[%s1 + $0x31c] sm:$0xf]
      %v433 = vld [vmem:[%s1 + $0x320] sm:$0xf]
      %v434 = vld [vmem:[%s1 + $0x324] sm:$0xf]
      %v435 = vld [vmem:[%s1 + $0x328] sm:$0xf]
      %v436 = vld [vmem:[%s1 + $0x32c] sm:$0xf]
      %v437 = vld [vmem:[%s1 + $0x330] sm:$0xf]
      %v438 = vld [vmem:[%s1 + $0x334] sm:$0xf]
      %v439 = vld [vmem:[%s1 + $0x338] sm:$0xf]
      %v440 = vld [vmem:[%s1 + $0x33c] sm:$0xf]
      %v441 = vld [vmem:[%s1 + $0x340] sm:$0xf]
      %v442 = vld [vmem:[%s1 + $0x344] sm:$0xf]
      %v443 = vld [vmem:[%s1 + $0x348] sm:$0xf]
      %v444 = vld [vmem:[%s1 + $0x34c] sm:$0xf]
      %v445 = vld [vmem:[%s1 + $0x350] sm:$0xf]
      %v446 = vld [vmem:[%s1 + $0x354] sm:$0xf]
      %v447 = vld [vmem:[%s1 + $0x358] sm:$0xf]
      %v448 = vld [vmem:[%s1 + $0x35c] sm:$0xf]
      %v449 = vld [vmem:[%s1 + $0x360] sm:$0xf]
      %v450 = vld [vmem:[%s1 + $0x364] sm:$0xf]
      %v451 = vld [vmem:[%s1 + $0x368] sm:$0xf]
      %v452 = vld [vmem:[%s1 + $0x36c] sm:$0xf]
      %v453 = vld [vmem:[%s1 + $0x370] sm:$0xf]
      %v454 = vld [vmem:[%s1 + $0x374] sm:$0xf]
      %v455 = vld [vmem:[%s1 + $0x378] sm:$0xf]
      %v456 = vld [vmem:[%s1 + $0x37c] sm:$0xf]
      %v457 = vld [vmem:[%s2] sm:$0x1]
      %v459 = vperm.slane %v457, 0
      %v517 = vunpack.c.l.b16 %v177
      %v518 = vunpack.c.h.b16 %v177
      %v519 = vunpack.c.l.b16 %v178
      %v520 = vunpack.c.h.b16 %v178
      %v521 = vunpack.c.l.b16 %v179
      %v522 = vunpack.c.h.b16 %v179
      %v523 = vunpack.c.l.b16 %v180
      %v524 = vunpack.c.h.b16 %v180
      %v525 = vunpack.c.l.b16 %v181
      %v526 = vunpack.c.h.b16 %v181
      %v527 = vunpack.c.l.b16 %v182
      %v528 = vunpack.c.h.b16 %v182
      %v529 = vunpack.c.l.b16 %v183
      %v530 = vunpack.c.h.b16 %v183
      %v531 = vunpack.c.l.b16 %v184
      %v532 = vunpack.c.h.b16 %v184
      %v533 = vunpack.c.l.b16 %v185
      %v534 = vunpack.c.h.b16 %v185
      %v535 = vunpack.c.l.b16 %v186
      %v536 = vunpack.c.h.b16 %v186
      %v537 = vunpack.c.l.b16 %v187
      %v538 = vunpack.c.h.b16 %v187
      %v539 = vunpack.c.l.b16 %v188
      %v540 = vunpack.c.h.b16 %v188
      %v541 = vunpack.c.l.b16 %v189
      %v542 = vunpack.c.h.b16 %v189
      %v543 = vunpack.c.l.b16 %v190
      %v544 = vunpack.c.h.b16 %v190
      %v545 = vunpack.c.l.b16 %v191
      %v546 = vunpack.c.h.b16 %v191
      %v547 = vunpack.c.l.b16 %v192
      %v548 = vunpack.c.h.b16 %v192
      %v549 = vunpack.c.l.b16 %v193
      %v550 = vunpack.c.h.b16 %v193
      %v551 = vunpack.c.l.b16 %v194
      %v552 = vunpack.c.h.b16 %v194
      %v553 = vunpack.c.l.b16 %v195
      %v554 = vunpack.c.h.b16 %v195
      %v555 = vunpack.c.l.b16 %v196
      %v556 = vunpack.c.h.b16 %v196
      %v557 = vunpack.c.l.b16 %v197
      %v558 = vunpack.c.h.b16 %v197
      %v559 = vunpack.c.l.b16 %v198
      %v560 = vunpack.c.h.b16 %v198
      %v561 = vunpack.c.l.b16 %v199
      %v562 = vunpack.c.h.b16 %v199
      %v563 = vunpack.c.l.b16 %v200
      %v564 = vunpack.c.h.b16 %v200
      %v565 = vunpack.c.l.b16 %v201
      %v566 = vunpack.c.h.b16 %v201
      %v567 = vunpack.c.l.b16 %v202
      %v568 = vunpack.c.h.b16 %v202
      %v569 = vunpack.c.l.b16 %v203
      %v570 = vunpack.c.h.b16 %v203
      %v571 = vunpack.c.l.b16 %v204
      %v572 = vunpack.c.h.b16 %v204
      %v573 = vunpack.c.l.b16 %v205
      %v574 = vunpack.c.h.b16 %v205
      %v575 = vunpack.c.l.b16 %v206
      %v576 = vunpack.c.h.b16 %v206
      %v577 = vunpack.c.l.b16 %v207
      %v578 = vunpack.c.h.b16 %v207
      %v579 = vunpack.c.l.b16 %v208
      %v580 = vunpack.c.h.b16 %v208
      %v581 = vunpack.c.l.b16 %v209
      %v582 = vunpack.c.h.b16 %v209
      %v583 = vunpack.c.l.b16 %v210
      %v584 = vunpack.c.h.b16 %v210
      %v585 = vunpack.c.l.b16 %v211
      %v586 = vunpack.c.h.b16 %v211
      %v587 = vunpack.c.l.b16 %v212
      %v588 = vunpack.c.h.b16 %v212
      %v589 = vunpack.c.l.b16 %v213
      %v590 = vunpack.c.h.b16 %v213
      %v591 = vunpack.c.l.b16 %v214
      %v592 = vunpack.c.h.b16 %v214
      %v593 = vunpack.c.l.b16 %v215
      %v594 = vunpack.c.h.b16 %v215
      %v595 = vunpack.c.l.b16 %v216
      %v596 = vunpack.c.h.b16 %v216
      %v597 = vunpack.c.l.b16 %v217
      %v598 = vunpack.c.h.b16 %v217
      %v599 = vunpack.c.l.b16 %v218
      %v600 = vunpack.c.h.b16 %v218
      %v601 = vunpack.c.l.b16 %v219
      %v602 = vunpack.c.h.b16 %v219
      %v603 = vunpack.c.l.b16 %v220
      %v604 = vunpack.c.h.b16 %v220
      %v605 = vunpack.c.l.b16 %v221
      %v606 = vunpack.c.h.b16 %v221
      %v607 = vunpack.c.l.b16 %v222
      %v608 = vunpack.c.h.b16 %v222
      %v609 = vunpack.c.l.b16 %v223
      %v610 = vunpack.c.h.b16 %v223
      %v611 = vunpack.c.l.b16 %v224
      %v612 = vunpack.c.h.b16 %v224
      %v613 = vunpack.c.l.b16 %v225
      %v614 = vunpack.c.h.b16 %v225
      %v615 = vunpack.c.l.b16 %v226
      %v616 = vunpack.c.h.b16 %v226
      %v617 = vunpack.c.l.b16 %v227
      %v618 = vunpack.c.h.b16 %v227
      %v619 = vunpack.c.l.b16 %v228
      %v620 = vunpack.c.h.b16 %v228
      %v621 = vunpack.c.l.b16 %v229
      %v622 = vunpack.c.h.b16 %v229
      %v623 = vunpack.c.l.b16 %v230
      %v624 = vunpack.c.h.b16 %v230
      %v625 = vunpack.c.l.b16 %v231
      %v626 = vunpack.c.h.b16 %v231
      %v627 = vunpack.c.l.b16 %v232
      %v628 = vunpack.c.h.b16 %v232
      %v629 = vpack.c.b16 %v531, %v517
      %v630 = vpack.c.b16 %v532, %v518
      %v631 = vpack.c.b16 %v533, %v519
      %v632 = vpack.c.b16 %v534, %v520
      %v633 = vpack.c.b16 %v535, %v521
      %v634 = vpack.c.b16 %v536, %v522
      %v635 = vpack.c.b16 %v537, %v523
      %v636 = vpack.c.b16 %v538, %v524
      %v637 = vpack.c.b16 %v539, %v525
      %v638 = vpack.c.b16 %v540, %v526
      %v639 = vpack.c.b16 %v541, %v527
      %v640 = vpack.c.b16 %v542, %v528
      %v641 = vpack.c.b16 %v543, %v529
      %v642 = vpack.c.b16 %v544, %v530
      %v643 = vpack.c.b16 %v559, %v545
      %v644 = vpack.c.b16 %v560, %v546
      %v645 = vpack.c.b16 %v561, %v547
      %v646 = vpack.c.b16 %v562, %v548
      %v647 = vpack.c.b16 %v563, %v549
      %v648 = vpack.c.b16 %v564, %v550
      %v649 = vpack.c.b16 %v565, %v551
      %v650 = vpack.c.b16 %v566, %v552
      %v651 = vpack.c.b16 %v567, %v553
      %v652 = vpack.c.b16 %v568, %v554
      %v653 = vpack.c.b16 %v569, %v555
      %v654 = vpack.c.b16 %v570, %v556
      %v655 = vpack.c.b16 %v571, %v557
      %v656 = vpack.c.b16 %v572, %v558
      %v657 = vpack.c.b16 %v587, %v573
      %v658 = vpack.c.b16 %v588, %v574
      %v659 = vpack.c.b16 %v589, %v575
      %v660 = vpack.c.b16 %v590, %v576
      %v661 = vpack.c.b16 %v591, %v577
      %v662 = vpack.c.b16 %v592, %v578
      %v663 = vpack.c.b16 %v593, %v579
      %v664 = vpack.c.b16 %v594, %v580
      %v665 = vpack.c.b16 %v595, %v581
      %v666 = vpack.c.b16 %v596, %v582
      %v667 = vpack.c.b16 %v597, %v583
      %v668 = vpack.c.b16 %v598, %v584
      %v669 = vpack.c.b16 %v599, %v585
      %v670 = vpack.c.b16 %v600, %v586
      %v671 = vpack.c.b16 %v615, %v601
      %v672 = vpack.c.b16 %v616, %v602
      %v673 = vpack.c.b16 %v617, %v603
      %v674 = vpack.c.b16 %v618, %v604
      %v675 = vpack.c.b16 %v619, %v605
      %v676 = vpack.c.b16 %v620, %v606
      %v677 = vpack.c.b16 %v621, %v607
      %v678 = vpack.c.b16 %v622, %v608
      %v679 = vpack.c.b16 %v623, %v609
      %v680 = vpack.c.b16 %v624, %v610
      %v681 = vpack.c.b16 %v625, %v611
      %v682 = vpack.c.b16 %v626, %v612
      %v683 = vpack.c.b16 %v627, %v613
      %v684 = vpack.c.b16 %v628, %v614
      %v965 = vunpack.c.l.b16 %v233
      %v966 = vunpack.c.l.b16 %v234
      %v967 = vunpack.c.l.b16 %v235
      %v968 = vunpack.c.l.b16 %v236
      %v969 = vunpack.c.l.b16 %v237
      %v970 = vunpack.c.l.b16 %v238
      %v971 = vunpack.c.l.b16 %v239
      %v972 = vunpack.c.l.b16 %v240
      %v973 = vunpack.c.l.b16 %v241
      %v974 = vunpack.c.l.b16 %v242
      %v975 = vunpack.c.l.b16 %v243
      %v976 = vunpack.c.l.b16 %v244
      %v977 = vunpack.c.l.b16 %v245
      %v978 = vunpack.c.l.b16 %v246
      %v979 = vunpack.c.l.b16 %v247
      %v980 = vunpack.c.l.b16 %v248
      %v981 = vunpack.c.l.b16 %v249
      %v982 = vunpack.c.l.b16 %v250
      %v983 = vunpack.c.l.b16 %v251
      %v984 = vunpack.c.l.b16 %v252
      %v985 = vunpack.c.l.b16 %v253
      %v986 = vunpack.c.l.b16 %v254
      %v987 = vunpack.c.l.b16 %v255
      %v988 = vunpack.c.l.b16 %v256
      %v989 = vunpack.c.l.b16 %v257
      %v990 = vunpack.c.l.b16 %v258
      %v991 = vunpack.c.l.b16 %v259
      %v992 = vunpack.c.l.b16 %v260
      %v993 = vunpack.c.l.b16 %v261
      %v994 = vunpack.c.l.b16 %v262
      %v995 = vunpack.c.l.b16 %v263
      %v996 = vunpack.c.l.b16 %v264
      %v997 = vunpack.c.l.b16 %v265
      %v998 = vunpack.c.l.b16 %v266
      %v999 = vunpack.c.l.b16 %v267
      %v1000 = vunpack.c.l.b16 %v268
      %v1001 = vunpack.c.l.b16 %v269
      %v1002 = vunpack.c.l.b16 %v270
      %v1003 = vunpack.c.l.b16 %v271
      %v1004 = vunpack.c.l.b16 %v272
      %v1005 = vunpack.c.l.b16 %v273
      %v1006 = vunpack.c.l.b16 %v274
      %v1007 = vunpack.c.l.b16 %v275
      %v1008 = vunpack.c.l.b16 %v276
      %v1009 = vunpack.c.l.b16 %v277
      %v1010 = vunpack.c.l.b16 %v278
      %v1011 = vunpack.c.l.b16 %v279
      %v1012 = vunpack.c.l.b16 %v280
      %v1013 = vunpack.c.l.b16 %v281
      %v1014 = vunpack.c.l.b16 %v282
      %v1015 = vunpack.c.l.b16 %v283
      %v1016 = vunpack.c.l.b16 %v284
      %v1017 = vunpack.c.l.b16 %v285
      %v1018 = vunpack.c.l.b16 %v286
      %v1019 = vunpack.c.l.b16 %v287
      %v1020 = vunpack.c.l.b16 %v288
      %v1021 = vunpack.c.l.b16 %v289
      %v1022 = vunpack.c.l.b16 %v290
      %v1023 = vunpack.c.l.b16 %v291
      %v1024 = vunpack.c.l.b16 %v292
      %v1025 = vunpack.c.l.b16 %v293
      %v1026 = vunpack.c.l.b16 %v294
      %v1027 = vunpack.c.l.b16 %v295
      %v1028 = vunpack.c.l.b16 %v296
      %v1029 = vunpack.c.l.b16 %v297
      %v1030 = vunpack.c.l.b16 %v298
      %v1031 = vunpack.c.l.b16 %v299
      %v1032 = vunpack.c.l.b16 %v300
      %v1033 = vunpack.c.l.b16 %v301
      %v1034 = vunpack.c.l.b16 %v302
      %v1035 = vunpack.c.l.b16 %v303
      %v1036 = vunpack.c.l.b16 %v304
      %v1037 = vunpack.c.l.b16 %v305
      %v1038 = vunpack.c.l.b16 %v306
      %v1039 = vunpack.c.l.b16 %v307
      %v1040 = vunpack.c.l.b16 %v308
      %v1041 = vunpack.c.l.b16 %v309
      %v1042 = vunpack.c.l.b16 %v310
      %v1043 = vunpack.c.l.b16 %v311
      %v1044 = vunpack.c.l.b16 %v312
      %v1045 = vunpack.c.l.b16 %v313
      %v1046 = vunpack.c.l.b16 %v314
      %v1047 = vunpack.c.l.b16 %v315
      %v1048 = vunpack.c.l.b16 %v316
      %v1049 = vunpack.c.l.b16 %v317
      %v1050 = vunpack.c.l.b16 %v318
      %v1051 = vunpack.c.l.b16 %v319
      %v1052 = vunpack.c.l.b16 %v320
      %v1053 = vunpack.c.l.b16 %v321
      %v1054 = vunpack.c.l.b16 %v322
      %v1055 = vunpack.c.l.b16 %v323
      %v1056 = vunpack.c.l.b16 %v324
      %v1057 = vunpack.c.l.b16 %v325
      %v1058 = vunpack.c.l.b16 %v326
      %v1059 = vunpack.c.l.b16 %v327
      %v1060 = vunpack.c.l.b16 %v328
      %v1061 = vunpack.c.l.b16 %v329
      %v1062 = vunpack.c.l.b16 %v330
      %v1063 = vunpack.c.l.b16 %v331
      %v1064 = vunpack.c.l.b16 %v332
      %v1065 = vunpack.c.l.b16 %v333
      %v1066 = vunpack.c.l.b16 %v334
      %v1067 = vunpack.c.l.b16 %v335
      %v1068 = vunpack.c.l.b16 %v336
      %v1069 = vunpack.c.l.b16 %v337
      %v1070 = vunpack.c.l.b16 %v338
      %v1071 = vunpack.c.l.b16 %v339
      %v1072 = vunpack.c.l.b16 %v340
      %v1073 = vunpack.c.l.b16 %v341
      %v1074 = vunpack.c.l.b16 %v342
      %v1075 = vunpack.c.l.b16 %v343
      %v1076 = vunpack.c.l.b16 %v344
      %v1077 = vunpack.c.l.b16 %v345
      %v1078 = vunpack.c.l.b16 %v346
      %v1079 = vunpack.c.l.b16 %v347
      %v1080 = vunpack.c.l.b16 %v348
      %v1081 = vunpack.c.l.b16 %v349
      %v1082 = vunpack.c.l.b16 %v350
      %v1083 = vunpack.c.l.b16 %v351
      %v1084 = vunpack.c.l.b16 %v352
      %v1085 = vunpack.c.l.b16 %v353
      %v1086 = vunpack.c.l.b16 %v354
      %v1087 = vunpack.c.l.b16 %v355
      %v1088 = vunpack.c.l.b16 %v356
      %v1089 = vunpack.c.l.b16 %v357
      %v1090 = vunpack.c.l.b16 %v358
      %v1091 = vunpack.c.l.b16 %v359
      %v1092 = vunpack.c.l.b16 %v360
      %v1093 = vunpack.c.l.b16 %v361
      %v1094 = vunpack.c.l.b16 %v362
      %v1095 = vunpack.c.l.b16 %v363
      %v1096 = vunpack.c.l.b16 %v364
      %v1097 = vunpack.c.l.b16 %v365
      %v1098 = vunpack.c.l.b16 %v366
      %v1099 = vunpack.c.l.b16 %v367
      %v1100 = vunpack.c.l.b16 %v368
      %v1101 = vunpack.c.l.b16 %v369
      %v1102 = vunpack.c.l.b16 %v370
      %v1103 = vunpack.c.l.b16 %v371
      %v1104 = vunpack.c.l.b16 %v372
      %v1105 = vunpack.c.l.b16 %v373
      %v1106 = vunpack.c.l.b16 %v374
      %v1107 = vunpack.c.l.b16 %v375
      %v1108 = vunpack.c.l.b16 %v376
      %v1109 = vunpack.c.l.b16 %v377
      %v1110 = vunpack.c.l.b16 %v378
      %v1111 = vunpack.c.l.b16 %v379
      %v1112 = vunpack.c.l.b16 %v380
      %v1113 = vunpack.c.l.b16 %v381
      %v1114 = vunpack.c.l.b16 %v382
      %v1115 = vunpack.c.l.b16 %v383
      %v1116 = vunpack.c.l.b16 %v384
      %v1117 = vunpack.c.l.b16 %v385
      %v1118 = vunpack.c.l.b16 %v386
      %v1119 = vunpack.c.l.b16 %v387
      %v1120 = vunpack.c.l.b16 %v388
      %v1121 = vunpack.c.l.b16 %v389
      %v1122 = vunpack.c.l.b16 %v390
      %v1123 = vunpack.c.l.b16 %v391
      %v1124 = vunpack.c.l.b16 %v392
      %v1125 = vunpack.c.l.b16 %v393
      %v1126 = vunpack.c.l.b16 %v394
      %v1127 = vunpack.c.l.b16 %v395
      %v1128 = vunpack.c.l.b16 %v396
      %v1129 = vunpack.c.l.b16 %v397
      %v1130 = vunpack.c.l.b16 %v398
      %v1131 = vunpack.c.l.b16 %v399
      %v1132 = vunpack.c.l.b16 %v400
      %v1133 = vunpack.c.l.b16 %v401
      %v1134 = vunpack.c.l.b16 %v402
      %v1135 = vunpack.c.l.b16 %v403
      %v1136 = vunpack.c.l.b16 %v404
      %v1137 = vunpack.c.l.b16 %v405
      %v1138 = vunpack.c.l.b16 %v406
      %v1139 = vunpack.c.l.b16 %v407
      %v1140 = vunpack.c.l.b16 %v408
      %v1141 = vunpack.c.l.b16 %v409
      %v1142 = vunpack.c.l.b16 %v410
      %v1143 = vunpack.c.l.b16 %v411
      %v1144 = vunpack.c.l.b16 %v412
      %v1145 = vunpack.c.l.b16 %v413
      %v1146 = vunpack.c.l.b16 %v414
      %v1147 = vunpack.c.l.b16 %v415
      %v1148 = vunpack.c.l.b16 %v416
      %v1149 = vunpack.c.l.b16 %v417
      %v1150 = vunpack.c.l.b16 %v418
      %v1151 = vunpack.c.l.b16 %v419
      %v1152 = vunpack.c.l.b16 %v420
      %v1153 = vunpack.c.l.b16 %v421
      %v1154 = vunpack.c.l.b16 %v422
      %v1155 = vunpack.c.l.b16 %v423
      %v1156 = vunpack.c.l.b16 %v424
      %v1157 = vunpack.c.l.b16 %v425
      %v1158 = vunpack.c.l.b16 %v426
      %v1159 = vunpack.c.l.b16 %v427
      %v1160 = vunpack.c.l.b16 %v428
      %v1161 = vunpack.c.l.b16 %v429
      %v1162 = vunpack.c.l.b16 %v430
      %v1163 = vunpack.c.l.b16 %v431
      %v1164 = vunpack.c.l.b16 %v432
      %v1165 = vunpack.c.l.b16 %v433
      %v1166 = vunpack.c.l.b16 %v434
      %v1167 = vunpack.c.l.b16 %v435
      %v1168 = vunpack.c.l.b16 %v436
      %v1169 = vunpack.c.l.b16 %v437
      %v1170 = vunpack.c.l.b16 %v438
      %v1171 = vunpack.c.l.b16 %v439
      %v1172 = vunpack.c.l.b16 %v440
      %v1173 = vunpack.c.l.b16 %v441
      %v1174 = vunpack.c.l.b16 %v442
      %v1175 = vunpack.c.l.b16 %v443
      %v1176 = vunpack.c.l.b16 %v444
      %v1177 = vunpack.c.l.b16 %v445
      %v1178 = vunpack.c.l.b16 %v446
      %v1179 = vunpack.c.l.b16 %v447
      %v1180 = vunpack.c.l.b16 %v448
      %v1181 = vunpack.c.l.b16 %v449
      %v1182 = vunpack.c.l.b16 %v450
      %v1183 = vunpack.c.l.b16 %v451
      %v1184 = vunpack.c.l.b16 %v452
      %v1185 = vunpack.c.l.b16 %v453
      %v1186 = vunpack.c.l.b16 %v454
      %v1187 = vunpack.c.l.b16 %v455
      %v1188 = vunpack.c.l.b16 %v456
      %v1189 = vpack.c.b16 %v966, %v965
      %v1190 = vpack.c.b16 %v968, %v967
      %v1191 = vpack.c.b16 %v970, %v969
      %v1192 = vpack.c.b16 %v972, %v971
      %v1193 = vpack.c.b16 %v974, %v973
      %v1194 = vpack.c.b16 %v976, %v975
      %v1195 = vpack.c.b16 %v978, %v977
      %v1196 = vpack.c.b16 %v980, %v979
      %v1197 = vpack.c.b16 %v982, %v981
      %v1198 = vpack.c.b16 %v984, %v983
      %v1199 = vpack.c.b16 %v986, %v985
      %v1200 = vpack.c.b16 %v988, %v987
      %v1201 = vpack.c.b16 %v990, %v989
      %v1202 = vpack.c.b16 %v992, %v991
      %v1203 = vpack.c.b16 %v994, %v993
      %v1204 = vpack.c.b16 %v996, %v995
      %v1205 = vpack.c.b16 %v998, %v997
      %v1206 = vpack.c.b16 %v1000, %v999
      %v1207 = vpack.c.b16 %v1002, %v1001
      %v1208 = vpack.c.b16 %v1004, %v1003
      %v1209 = vpack.c.b16 %v1006, %v1005
      %v1210 = vpack.c.b16 %v1008, %v1007
      %v1211 = vpack.c.b16 %v1010, %v1009
      %v1212 = vpack.c.b16 %v1012, %v1011
      %v1213 = vpack.c.b16 %v1014, %v1013
      %v1214 = vpack.c.b16 %v1016, %v1015
      %v1215 = vpack.c.b16 %v1018, %v1017
      %v1216 = vpack.c.b16 %v1020, %v1019
      %v1217 = vpack.c.b16 %v1022, %v1021
      %v1218 = vpack.c.b16 %v1024, %v1023
      %v1219 = vpack.c.b16 %v1026, %v1025
      %v1220 = vpack.c.b16 %v1028, %v1027
      %v1221 = vpack.c.b16 %v1030, %v1029
      %v1222 = vpack.c.b16 %v1032, %v1031
      %v1223 = vpack.c.b16 %v1034, %v1033
      %v1224 = vpack.c.b16 %v1036, %v1035
      %v1225 = vpack.c.b16 %v1038, %v1037
      %v1226 = vpack.c.b16 %v1040, %v1039
      %v1227 = vpack.c.b16 %v1042, %v1041
      %v1228 = vpack.c.b16 %v1044, %v1043
      %v1229 = vpack.c.b16 %v1046, %v1045
      %v1230 = vpack.c.b16 %v1048, %v1047
      %v1231 = vpack.c.b16 %v1050, %v1049
      %v1232 = vpack.c.b16 %v1052, %v1051
      %v1233 = vpack.c.b16 %v1054, %v1053
      %v1234 = vpack.c.b16 %v1056, %v1055
      %v1235 = vpack.c.b16 %v1058, %v1057
      %v1236 = vpack.c.b16 %v1060, %v1059
      %v1237 = vpack.c.b16 %v1062, %v1061
      %v1238 = vpack.c.b16 %v1064, %v1063
      %v1239 = vpack.c.b16 %v1066, %v1065
      %v1240 = vpack.c.b16 %v1068, %v1067
      %v1241 = vpack.c.b16 %v1070, %v1069
      %v1242 = vpack.c.b16 %v1072, %v1071
      %v1243 = vpack.c.b16 %v1074, %v1073
      %v1244 = vpack.c.b16 %v1076, %v1075
      %v1245 = vpack.c.b16 %v1078, %v1077
      %v1246 = vpack.c.b16 %v1080, %v1079
      %v1247 = vpack.c.b16 %v1082, %v1081
      %v1248 = vpack.c.b16 %v1084, %v1083
      %v1249 = vpack.c.b16 %v1086, %v1085
      %v1250 = vpack.c.b16 %v1088, %v1087
      %v1251 = vpack.c.b16 %v1090, %v1089
      %v1252 = vpack.c.b16 %v1092, %v1091
      %v1253 = vpack.c.b16 %v1094, %v1093
      %v1254 = vpack.c.b16 %v1096, %v1095
      %v1255 = vpack.c.b16 %v1098, %v1097
      %v1256 = vpack.c.b16 %v1100, %v1099
      %v1257 = vpack.c.b16 %v1102, %v1101
      %v1258 = vpack.c.b16 %v1104, %v1103
      %v1259 = vpack.c.b16 %v1106, %v1105
      %v1260 = vpack.c.b16 %v1108, %v1107
      %v1261 = vpack.c.b16 %v1110, %v1109
      %v1262 = vpack.c.b16 %v1112, %v1111
      %v1263 = vpack.c.b16 %v1114, %v1113
      %v1264 = vpack.c.b16 %v1116, %v1115
      %v1265 = vpack.c.b16 %v1118, %v1117
      %v1266 = vpack.c.b16 %v1120, %v1119
      %v1267 = vpack.c.b16 %v1122, %v1121
      %v1268 = vpack.c.b16 %v1124, %v1123
      %v1269 = vpack.c.b16 %v1126, %v1125
      %v1270 = vpack.c.b16 %v1128, %v1127
      %v1271 = vpack.c.b16 %v1130, %v1129
      %v1272 = vpack.c.b16 %v1132, %v1131
      %v1273 = vpack.c.b16 %v1134, %v1133
      %v1274 = vpack.c.b16 %v1136, %v1135
      %v1275 = vpack.c.b16 %v1138, %v1137
      %v1276 = vpack.c.b16 %v1140, %v1139
      %v1277 = vpack.c.b16 %v1142, %v1141
      %v1278 = vpack.c.b16 %v1144, %v1143
      %v1279 = vpack.c.b16 %v1146, %v1145
      %v1280 = vpack.c.b16 %v1148, %v1147
      %v1281 = vpack.c.b16 %v1150, %v1149
      %v1282 = vpack.c.b16 %v1152, %v1151
      %v1283 = vpack.c.b16 %v1154, %v1153
      %v1284 = vpack.c.b16 %v1156, %v1155
      %v1285 = vpack.c.b16 %v1158, %v1157
      %v1286 = vpack.c.b16 %v1160, %v1159
      %v1287 = vpack.c.b16 %v1162, %v1161
      %v1288 = vpack.c.b16 %v1164, %v1163
      %v1289 = vpack.c.b16 %v1166, %v1165
      %v1290 = vpack.c.b16 %v1168, %v1167
      %v1291 = vpack.c.b16 %v1170, %v1169
      %v1292 = vpack.c.b16 %v1172, %v1171
      %v1293 = vpack.c.b16 %v1174, %v1173
      %v1294 = vpack.c.b16 %v1176, %v1175
      %v1295 = vpack.c.b16 %v1178, %v1177
      %v1296 = vpack.c.b16 %v1180, %v1179
      %v1297 = vpack.c.b16 %v1182, %v1181
      %v1298 = vpack.c.b16 %v1184, %v1183
      %v1299 = vpack.c.b16 %v1186, %v1185
      %v1300 = vpack.c.b16 %v1188, %v1187
      %1413 = vmatpush.bf16.msra.mxu0 %v1196
      %1414 = vmatpush.bf16.msra.mxu0 %v1195
      %1415 = vmatpush.bf16.msra.mxu0 %v1194
      %1416 = vmatpush.bf16.msra.mxu0 %v1193
      %1417 = vmatpush.bf16.msra.mxu0 %v1192
      %1418 = vmatpush.bf16.msra.mxu0 %v1191
      %1419 = vmatpush.bf16.msra.mxu0 %v1190
      %1420 = vmatpush.bf16.msra.mxu0 %v1189
      %1421 = vmatmul.bf16.gmra.mxu0 %v629
      %v1422 = vpop.f32.mrf.mxu0
      %v1423 = vadd.f32 %v459, %v1422
      %v1424 = vpop.f32.mrf.mxu0
      %v1425 = vadd.f32 %v459, %v1424
      %1426 = vmatmul.bf16.gmra.mxu0 %v643
      %v1427 = vpop.f32.mrf.mxu0
      %v1428 = vadd.f32 %v459, %v1427
      %v1429 = vpop.f32.mrf.mxu0
      %v1430 = vadd.f32 %v459, %v1429
      %1431 = vmatmul.bf16.gmra.mxu0 %v657
      %v1432 = vpop.f32.mrf.mxu0
      %v1433 = vadd.f32 %v459, %v1432
      %v1434 = vpop.f32.mrf.mxu0
      %v1435 = vadd.f32 %v459, %v1434
      %1436 = vmatmul.bf16.gmra.mxu0 %v671
      %v1437 = vpop.f32.mrf.mxu0
      %v1438 = vadd.f32 %v459, %v1437
      %v1439 = vpop.f32.mrf.mxu0
      %v1440 = vadd.f32 %v459, %v1439
      %1441 = vdwg.mxu0
      %1442 = vmatpush.bf16.msra.mxu0 %v1204
      %1443 = vmatpush.bf16.msra.mxu0 %v1203
      %1444 = vmatpush.bf16.msra.mxu0 %v1202
      %1445 = vmatpush.bf16.msra.mxu0 %v1201
      %1446 = vmatpush.bf16.msra.mxu0 %v1200
      %1447 = vmatpush.bf16.msra.mxu0 %v1199
      %1448 = vmatpush.bf16.msra.mxu0 %v1198
      %1449 = vmatpush.bf16.msra.mxu0 %v1197
      %1450 = vmatmul.bf16.gmra.mxu0 %v630
      %v1451 = vpop.f32.mrf.mxu0
      %v1452 = vadd.f32 %v1423, %v1451
      %v1453 = vpop.f32.mrf.mxu0
      %v1454 = vadd.f32 %v1425, %v1453
      %1455 = vmatmul.bf16.gmra.mxu0 %v644
      %v1456 = vpop.f32.mrf.mxu0
      %v1457 = vadd.f32 %v1428, %v1456
      %v1458 = vpop.f32.mrf.mxu0
      %v1459 = vadd.f32 %v1430, %v1458
      %1460 = vmatmul.bf16.gmra.mxu0 %v658
      %v1461 = vpop.f32.mrf.mxu0
      %v1462 = vadd.f32 %v1433, %v1461
      %v1463 = vpop.f32.mrf.mxu0
      %v1464 = vadd.f32 %v1435, %v1463
      %1465 = vmatmul.bf16.gmra.mxu0 %v672
      %v1466 = vpop.f32.mrf.mxu0
      %v1467 = vadd.f32 %v1438, %v1466
      %v1468 = vpop.f32.mrf.mxu0
      %v1469 = vadd.f32 %v1440, %v1468
      %1470 = vdwg.mxu0
      %1471 = vmatpush.bf16.msra.mxu0 %v1212
      %1472 = vmatpush.bf16.msra.mxu0 %v1211
      %1473 = vmatpush.bf16.msra.mxu0 %v1210
      %1474 = vmatpush.bf16.msra.mxu0 %v1209
      %1475 = vmatpush.bf16.msra.mxu0 %v1208
      %1476 = vmatpush.bf16.msra.mxu0 %v1207
      %1477 = vmatpush.bf16.msra.mxu0 %v1206
      %1478 = vmatpush.bf16.msra.mxu0 %v1205
      %1479 = vmatmul.bf16.gmra.mxu0 %v631
      %v1480 = vpop.f32.mrf.mxu0
      %v1481 = vadd.f32 %v1452, %v1480
      %v1482 = vpop.f32.mrf.mxu0
      %v1483 = vadd.f32 %v1454, %v1482
      %1484 = vmatmul.bf16.gmra.mxu0 %v645
      %v1485 = vpop.f32.mrf.mxu0
      %v1486 = vadd.f32 %v1457, %v1485
      %v1487 = vpop.f32.mrf.mxu0
      %v1488 = vadd.f32 %v1459, %v1487
      %1489 = vmatmul.bf16.gmra.mxu0 %v659
      %v1490 = vpop.f32.mrf.mxu0
      %v1491 = vadd.f32 %v1462, %v1490
      %v1492 = vpop.f32.mrf.mxu0
      %v1493 = vadd.f32 %v1464, %v1492
      %1494 = vmatmul.bf16.gmra.mxu0 %v673
      %v1495 = vpop.f32.mrf.mxu0
      %v1496 = vadd.f32 %v1467, %v1495
      %v1497 = vpop.f32.mrf.mxu0
      %v1498 = vadd.f32 %v1469, %v1497
      %1499 = vdwg.mxu0
      %1500 = vmatpush.bf16.msra.mxu0 %v1220
      %1501 = vmatpush.bf16.msra.mxu0 %v1219
      %1502 = vmatpush.bf16.msra.mxu0 %v1218
      %1503 = vmatpush.bf16.msra.mxu0 %v1217
      %1504 = vmatpush.bf16.msra.mxu0 %v1216
      %1505 = vmatpush.bf16.msra.mxu0 %v1215
      %1506 = vmatpush.bf16.msra.mxu0 %v1214
      %1507 = vmatpush.bf16.msra.mxu0 %v1213
      %1508 = vmatmul.bf16.gmra.mxu0 %v632
      %v1509 = vpop.f32.mrf.mxu0
      %v1510 = vadd.f32 %v1481, %v1509
      %v1511 = vpop.f32.mrf.mxu0
      %v1512 = vadd.f32 %v1483, %v1511
      %1513 = vmatmul.bf16.gmra.mxu0 %v646
      %v1514 = vpop.f32.mrf.mxu0
      %v1515 = vadd.f32 %v1486, %v1514
      %v1516 = vpop.f32.mrf.mxu0
      %v1517 = vadd.f32 %v1488, %v1516
      %1518 = vmatmul.bf16.gmra.mxu0 %v660
      %v1519 = vpop.f32.mrf.mxu0
      %v1520 = vadd.f32 %v1491, %v1519
      %v1521 = vpop.f32.mrf.mxu0
      %v1522 = vadd.f32 %v1493, %v1521
      %1523 = vmatmul.bf16.gmra.mxu0 %v674
      %v1524 = vpop.f32.mrf.mxu0
      %v1525 = vadd.f32 %v1496, %v1524
      %v1526 = vpop.f32.mrf.mxu0
      %v1527 = vadd.f32 %v1498, %v1526
      %1528 = vdwg.mxu0
      %1529 = vmatpush.bf16.msra.mxu0 %v1228
      %1530 = vmatpush.bf16.msra.mxu0 %v1227
      %1531 = vmatpush.bf16.msra.mxu0 %v1226
      %1532 = vmatpush.bf16.msra.mxu0 %v1225
      %1533 = vmatpush.bf16.msra.mxu0 %v1224
      %1534 = vmatpush.bf16.msra.mxu0 %v1223
      %1535 = vmatpush.bf16.msra.mxu0 %v1222
      %1536 = vmatpush.bf16.msra.mxu0 %v1221
      %1537 = vmatmul.bf16.gmra.mxu0 %v633
      %v1538 = vpop.f32.mrf.mxu0
      %v1539 = vadd.f32 %v1510, %v1538
      %v1540 = vpop.f32.mrf.mxu0
      %v1541 = vadd.f32 %v1512, %v1540
      %1542 = vmatmul.bf16.gmra.mxu0 %v647
      %v1543 = vpop.f32.mrf.mxu0
      %v1544 = vadd.f32 %v1515, %v1543
      %v1545 = vpop.f32.mrf.mxu0
      %v1546 = vadd.f32 %v1517, %v1545
      %1547 = vmatmul.bf16.gmra.mxu0 %v661
      %v1548 = vpop.f32.mrf.mxu0
      %v1549 = vadd.f32 %v1520, %v1548
      %v1550 = vpop.f32.mrf.mxu0
      %v1551 = vadd.f32 %v1522, %v1550
      %1552 = vmatmul.bf16.gmra.mxu0 %v675
      %v1553 = vpop.f32.mrf.mxu0
      %v1554 = vadd.f32 %v1525, %v1553
      %v1555 = vpop.f32.mrf.mxu0
      %v1556 = vadd.f32 %v1527, %v1555
      %1557 = vdwg.mxu0
      %1558 = vmatpush.bf16.msra.mxu0 %v1236
      %1559 = vmatpush.bf16.msra.mxu0 %v1235
      %1560 = vmatpush.bf16.msra.mxu0 %v1234
      %1561 = vmatpush.bf16.msra.mxu0 %v1233
      %1562 = vmatpush.bf16.msra.mxu0 %v1232
      %1563 = vmatpush.bf16.msra.mxu0 %v1231
      %1564 = vmatpush.bf16.msra.mxu0 %v1230
      %1565 = vmatpush.bf16.msra.mxu0 %v1229
      %1566 = vmatmul.bf16.gmra.mxu0 %v634
      %v1567 = vpop.f32.mrf.mxu0
      %v1568 = vadd.f32 %v1539, %v1567
      %v1569 = vpop.f32.mrf.mxu0
      %v1570 = vadd.f32 %v1541, %v1569
      %1571 = vmatmul.bf16.gmra.mxu0 %v648
      %v1572 = vpop.f32.mrf.mxu0
      %v1573 = vadd.f32 %v1544, %v1572
      %v1574 = vpop.f32.mrf.mxu0
      %v1575 = vadd.f32 %v1546, %v1574
      %1576 = vmatmul.bf16.gmra.mxu0 %v662
      %v1577 = vpop.f32.mrf.mxu0
      %v1578 = vadd.f32 %v1549, %v1577
      %v1579 = vpop.f32.mrf.mxu0
      %v1580 = vadd.f32 %v1551, %v1579
      %1581 = vmatmul.bf16.gmra.mxu0 %v676
      %v1582 = vpop.f32.mrf.mxu0
      %v1583 = vadd.f32 %v1554, %v1582
      %v1584 = vpop.f32.mrf.mxu0
      %v1585 = vadd.f32 %v1556, %v1584
      %1586 = vdwg.mxu0
      %1587 = vmatpush.bf16.msra.mxu0 %v1244
      %1588 = vmatpush.bf16.msra.mxu0 %v1243
      %1589 = vmatpush.bf16.msra.mxu0 %v1242
      %1590 = vmatpush.bf16.msra.mxu0 %v1241
      %1591 = vmatpush.bf16.msra.mxu0 %v1240
      %1592 = vmatpush.bf16.msra.mxu0 %v1239
      %1593 = vmatpush.bf16.msra.mxu0 %v1238
      %1594 = vmatpush.bf16.msra.mxu0 %v1237
      %1595 = vmatmul.bf16.gmra.mxu0 %v635
      %v1596 = vpop.f32.mrf.mxu0
      %v1597 = vadd.f32 %v1568, %v1596
      %v1598 = vpop.f32.mrf.mxu0
      %v1599 = vadd.f32 %v1570, %v1598
      %1600 = vmatmul.bf16.gmra.mxu0 %v649
      %v1601 = vpop.f32.mrf.mxu0
      %v1602 = vadd.f32 %v1573, %v1601
      %v1603 = vpop.f32.mrf.mxu0
      %v1604 = vadd.f32 %v1575, %v1603
      %1605 = vmatmul.bf16.gmra.mxu0 %v663
      %v1606 = vpop.f32.mrf.mxu0
      %v1607 = vadd.f32 %v1578, %v1606
      %v1608 = vpop.f32.mrf.mxu0
      %v1609 = vadd.f32 %v1580, %v1608
      %1610 = vmatmul.bf16.gmra.mxu0 %v677
      %v1611 = vpop.f32.mrf.mxu0
      %v1612 = vadd.f32 %v1583, %v1611
      %v1613 = vpop.f32.mrf.mxu0
      %v1614 = vadd.f32 %v1585, %v1613
      %1615 = vdwg.mxu0
      %1616 = vmatpush.bf16.msra.mxu0 %v1252
      %1617 = vmatpush.bf16.msra.mxu0 %v1251
      %1618 = vmatpush.bf16.msra.mxu0 %v1250
      %1619 = vmatpush.bf16.msra.mxu0 %v1249
      %1620 = vmatpush.bf16.msra.mxu0 %v1248
      %1621 = vmatpush.bf16.msra.mxu0 %v1247
      %1622 = vmatpush.bf16.msra.mxu0 %v1246
      %1623 = vmatpush.bf16.msra.mxu0 %v1245
      %1624 = vmatmul.bf16.gmra.mxu0 %v636
      %v1625 = vpop.f32.mrf.mxu0
      %v1626 = vadd.f32 %v1597, %v1625
      %v1627 = vpop.f32.mrf.mxu0
      %v1628 = vadd.f32 %v1599, %v1627
      %1629 = vmatmul.bf16.gmra.mxu0 %v650
      %v1630 = vpop.f32.mrf.mxu0
      %v1631 = vadd.f32 %v1602, %v1630
      %v1632 = vpop.f32.mrf.mxu0
      %v1633 = vadd.f32 %v1604, %v1632
      %1634 = vmatmul.bf16.gmra.mxu0 %v664
      %v1635 = vpop.f32.mrf.mxu0
      %v1636 = vadd.f32 %v1607, %v1635
      %v1637 = vpop.f32.mrf.mxu0
      %v1638 = vadd.f32 %v1609, %v1637
      %1639 = vmatmul.bf16.gmra.mxu0 %v678
      %v1640 = vpop.f32.mrf.mxu0
      %v1641 = vadd.f32 %v1612, %v1640
      %v1642 = vpop.f32.mrf.mxu0
      %v1643 = vadd.f32 %v1614, %v1642
      %1644 = vdwg.mxu0
      %1645 = vmatpush.bf16.msra.mxu0 %v1260
      %1646 = vmatpush.bf16.msra.mxu0 %v1259
      %1647 = vmatpush.bf16.msra.mxu0 %v1258
      %1648 = vmatpush.bf16.msra.mxu0 %v1257
      %1649 = vmatpush.bf16.msra.mxu0 %v1256
      %1650 = vmatpush.bf16.msra.mxu0 %v1255
      %1651 = vmatpush.bf16.msra.mxu0 %v1254
      %1652 = vmatpush.bf16.msra.mxu0 %v1253
      %1653 = vmatmul.bf16.gmra.mxu0 %v637
      %v1654 = vpop.f32.mrf.mxu0
      %v1655 = vadd.f32 %v1626, %v1654
      %v1656 = vpop.f32.mrf.mxu0
      %v1657 = vadd.f32 %v1628, %v1656
      %1658 = vmatmul.bf16.gmra.mxu0 %v651
      %v1659 = vpop.f32.mrf.mxu0
      %v1660 = vadd.f32 %v1631, %v1659
      %v1661 = vpop.f32.mrf.mxu0
      %v1662 = vadd.f32 %v1633, %v1661
      %1663 = vmatmul.bf16.gmra.mxu0 %v665
      %v1664 = vpop.f32.mrf.mxu0
      %v1665 = vadd.f32 %v1636, %v1664
      %v1666 = vpop.f32.mrf.mxu0
      %v1667 = vadd.f32 %v1638, %v1666
      %1668 = vmatmul.bf16.gmra.mxu0 %v679
      %v1669 = vpop.f32.mrf.mxu0
      %v1670 = vadd.f32 %v1641, %v1669
      %v1671 = vpop.f32.mrf.mxu0
      %v1672 = vadd.f32 %v1643, %v1671
      %1673 = vdwg.mxu0
      %1674 = vmatpush.bf16.msra.mxu0 %v1268
      %1675 = vmatpush.bf16.msra.mxu0 %v1267
      %1676 = vmatpush.bf16.msra.mxu0 %v1266
      %1677 = vmatpush.bf16.msra.mxu0 %v1265
      %1678 = vmatpush.bf16.msra.mxu0 %v1264
      %1679 = vmatpush.bf16.msra.mxu0 %v1263
      %1680 = vmatpush.bf16.msra.mxu0 %v1262
      %1681 = vmatpush.bf16.msra.mxu0 %v1261
      %1682 = vmatmul.bf16.gmra.mxu0 %v638
      %v1683 = vpop.f32.mrf.mxu0
      %v1684 = vadd.f32 %v1655, %v1683
      %v1685 = vpop.f32.mrf.mxu0
      %v1686 = vadd.f32 %v1657, %v1685
      %1687 = vmatmul.bf16.gmra.mxu0 %v652
      %v1688 = vpop.f32.mrf.mxu0
      %v1689 = vadd.f32 %v1660, %v1688
      %v1690 = vpop.f32.mrf.mxu0
      %v1691 = vadd.f32 %v1662, %v1690
      %1692 = vmatmul.bf16.gmra.mxu0 %v666
      %v1693 = vpop.f32.mrf.mxu0
      %v1694 = vadd.f32 %v1665, %v1693
      %v1695 = vpop.f32.mrf.mxu0
      %v1696 = vadd.f32 %v1667, %v1695
      %1697 = vmatmul.bf16.gmra.mxu0 %v680
      %v1698 = vpop.f32.mrf.mxu0
      %v1699 = vadd.f32 %v1670, %v1698
      %v1700 = vpop.f32.mrf.mxu0
      %v1701 = vadd.f32 %v1672, %v1700
      %1702 = vdwg.mxu0
      %1703 = vmatpush.bf16.msra.mxu0 %v1276
      %1704 = vmatpush.bf16.msra.mxu0 %v1275
      %1705 = vmatpush.bf16.msra.mxu0 %v1274
      %1706 = vmatpush.bf16.msra.mxu0 %v1273
      %1707 = vmatpush.bf16.msra.mxu0 %v1272
      %1708 = vmatpush.bf16.msra.mxu0 %v1271
      %1709 = vmatpush.bf16.msra.mxu0 %v1270
      %1710 = vmatpush.bf16.msra.mxu0 %v1269
      %1711 = vmatmul.bf16.gmra.mxu0 %v639
      %v1712 = vpop.f32.mrf.mxu0
      %v1713 = vadd.f32 %v1684, %v1712
      %v1714 = vpop.f32.mrf.mxu0
      %v1715 = vadd.f32 %v1686, %v1714
      %1716 = vmatmul.bf16.gmra.mxu0 %v653
      %v1717 = vpop.f32.mrf.mxu0
      %v1718 = vadd.f32 %v1689, %v1717
      %v1719 = vpop.f32.mrf.mxu0
      %v1720 = vadd.f32 %v1691, %v1719
      %1721 = vmatmul.bf16.gmra.mxu0 %v667
      %v1722 = vpop.f32.mrf.mxu0
      %v1723 = vadd.f32 %v1694, %v1722
      %v1724 = vpop.f32.mrf.mxu0
      %v1725 = vadd.f32 %v1696, %v1724
      %1726 = vmatmul.bf16.gmra.mxu0 %v681
      %v1727 = vpop.f32.mrf.mxu0
      %v1728 = vadd.f32 %v1699, %v1727
      %v1729 = vpop.f32.mrf.mxu0
      %v1730 = vadd.f32 %v1701, %v1729
      %1731 = vdwg.mxu0
      %1732 = vmatpush.bf16.msra.mxu0 %v1284
      %1733 = vmatpush.bf16.msra.mxu0 %v1283
      %1734 = vmatpush.bf16.msra.mxu0 %v1282
      %1735 = vmatpush.bf16.msra.mxu0 %v1281
      %1736 = vmatpush.bf16.msra.mxu0 %v1280
      %1737 = vmatpush.bf16.msra.mxu0 %v1279
      %1738 = vmatpush.bf16.msra.mxu0 %v1278
      %1739 = vmatpush.bf16.msra.mxu0 %v1277
      %1740 = vmatmul.bf16.gmra.mxu0 %v640
      %v1741 = vpop.f32.mrf.mxu0
      %v1742 = vadd.f32 %v1713, %v1741
      %v1743 = vpop.f32.mrf.mxu0
      %v1744 = vadd.f32 %v1715, %v1743
      %1745 = vmatmul.bf16.gmra.mxu0 %v654
      %v1746 = vpop.f32.mrf.mxu0
      %v1747 = vadd.f32 %v1718, %v1746
      %v1748 = vpop.f32.mrf.mxu0
      %v1749 = vadd.f32 %v1720, %v1748
      %1750 = vmatmul.bf16.gmra.mxu0 %v668
      %v1751 = vpop.f32.mrf.mxu0
      %v1752 = vadd.f32 %v1723, %v1751
      %v1753 = vpop.f32.mrf.mxu0
      %v1754 = vadd.f32 %v1725, %v1753
      %1755 = vmatmul.bf16.gmra.mxu0 %v682
      %v1756 = vpop.f32.mrf.mxu0
      %v1757 = vadd.f32 %v1728, %v1756
      %v1758 = vpop.f32.mrf.mxu0
      %v1759 = vadd.f32 %v1730, %v1758
      %1760 = vdwg.mxu0
      %1761 = vmatpush.bf16.msra.mxu0 %v1292
      %1762 = vmatpush.bf16.msra.mxu0 %v1291
      %1763 = vmatpush.bf16.msra.mxu0 %v1290
      %1764 = vmatpush.bf16.msra.mxu0 %v1289
      %1765 = vmatpush.bf16.msra.mxu0 %v1288
      %1766 = vmatpush.bf16.msra.mxu0 %v1287
      %1767 = vmatpush.bf16.msra.mxu0 %v1286
      %1768 = vmatpush.bf16.msra.mxu0 %v1285
      %1769 = vmatmul.bf16.gmra.mxu0 %v641
      %v1770 = vpop.f32.mrf.mxu0
      %v1771 = vadd.f32 %v1742, %v1770
      %v1772 = vpop.f32.mrf.mxu0
      %v1773 = vadd.f32 %v1744, %v1772
      %1774 = vmatmul.bf16.gmra.mxu0 %v655
      %v1775 = vpop.f32.mrf.mxu0
      %v1776 = vadd.f32 %v1747, %v1775
      %v1777 = vpop.f32.mrf.mxu0
      %v1778 = vadd.f32 %v1749, %v1777
      %1779 = vmatmul.bf16.gmra.mxu0 %v669
      %v1780 = vpop.f32.mrf.mxu0
      %v1781 = vadd.f32 %v1752, %v1780
      %v1782 = vpop.f32.mrf.mxu0
      %v1783 = vadd.f32 %v1754, %v1782
      %1784 = vmatmul.bf16.gmra.mxu0 %v683
      %v1785 = vpop.f32.mrf.mxu0
      %v1786 = vadd.f32 %v1757, %v1785
      %v1787 = vpop.f32.mrf.mxu0
      %v1788 = vadd.f32 %v1759, %v1787
      %1789 = vdwg.mxu0
      %1790 = vmatpush.bf16.msra.mxu0 %v1300
      %1791 = vmatpush.bf16.msra.mxu0 %v1299
      %1792 = vmatpush.bf16.msra.mxu0 %v1298
      %1793 = vmatpush.bf16.msra.mxu0 %v1297
      %1794 = vmatpush.bf16.msra.mxu0 %v1296
      %1795 = vmatpush.bf16.msra.mxu0 %v1295
      %1796 = vmatpush.bf16.msra.mxu0 %v1294
      %1797 = vmatpush.bf16.msra.mxu0 %v1293
      %1798 = vmatmul.bf16.gmra.mxu0 %v642
      %v1799 = vpop.f32.mrf.mxu0
      %v1800 = vadd.f32 %v1771, %v1799
      %v1801 = vpop.f32.mrf.mxu0
      %v1802 = vadd.f32 %v1773, %v1801
      %1803 = vmatmul.bf16.gmra.mxu0 %v656
      %v1804 = vpop.f32.mrf.mxu0
      %v1805 = vadd.f32 %v1776, %v1804
      %v1806 = vpop.f32.mrf.mxu0
      %v1807 = vadd.f32 %v1778, %v1806
      %1808 = vmatmul.bf16.gmra.mxu0 %v670
      %v1809 = vpop.f32.mrf.mxu0
      %v1810 = vadd.f32 %v1781, %v1809
      %v1811 = vpop.f32.mrf.mxu0
      %v1812 = vadd.f32 %v1783, %v1811
      %1813 = vmatmul.bf16.gmra.mxu0 %v684
      %v1814 = vpop.f32.mrf.mxu0
      %v1815 = vadd.f32 %v1786, %v1814
      %v1816 = vpop.f32.mrf.mxu0
      %v1817 = vadd.f32 %v1788, %v1816
      %1818 = vdwg.mxu0
      %v1819 = vmax.f32 %v1800, 0.0
      %v1820 = vmax.f32 %v1802, 0.0
      %v1821 = vmax.f32 %v1805, 0.0
      %v1822 = vmax.f32 %v1807, 0.0
      %v1823 = vmax.f32 %v1810, 0.0
      %v1824 = vmax.f32 %v1812, 0.0
      %v1825 = vmax.f32 %v1815, 0.0
      %v1826 = vmax.f32 %v1817, 0.0
      %1827 = vst [vmem:[%s175] sm:$0xff] %v1819
      %1828 = vst [vmem:[%s175 + $0x8] sm:$0xff] %v1820
      %1829 = vst [vmem:[%s175 + $0x10] sm:$0xff] %v1821
      %1830 = vst [vmem:[%s175 + $0x18] sm:$0xff] %v1822
      %1831 = vst [vmem:[%s175 + $0x20] sm:$0xff] %v1823
      %1832 = vst [vmem:[%s175 + $0x28] sm:$0xff] %v1824
      %1833 = vst [vmem:[%s175 + $0x30] sm:$0xff] %v1825
      %1834 = vst [vmem:[%s175 + $0x38] sm:$0xff] %v1826
      %s1835 = smul.u32 8, %s14
      %p1836 = scmp.lt.s32.totalorder %s1835, 15
      %s1837 = scalar_select %p1836, %s1835, 15
      %s1838 = smul.addr %s1837, 8
      %s1839 = scalar_lea.vmem %s3, %s1838
      // Predicated region
      $region33: #{patch_embed_3d_forward.3} parent=31 // pred_check
        %p1840 = pneg %p100
      $region34: #{patch_embed_3d_forward.3} parent=31 // pred_check_branch
        %1842 = sbr.rel (%p1840) target = $region36
      $region35: #{patch_embed_3d_forward.3} parent=31 // pred_region
        %s1843 = smul.u32 8, %s14
      $region36: #{patch_embed_3d_forward.3} parent=31 // pred_fallthru
        _
    $region32: #{patch_embed_3d_forward.3} parent=5 // pred_fallthru
      _
    %p1844 = scmp.le.s32.totalorder 2, %s9
    // Predicated region
    $region37: #{patch_embed_3d_forward.3} parent=5 // pred_check
      %p1845 = pneg %p1844
    $region38: #{patch_embed_3d_forward.3} parent=5 // pred_check_branch
      %1847 = sbr.rel (%p1845) target = $region40
    $region39: #{patch_embed_3d_forward.3} parent=5 // pred_region
      %s1848 = ssub.s32 %s9, 2
      // Predicated region
      $region41: #{patch_embed_3d_forward.3} parent=39 // pred_check
        %p1849 = pneg %p106
      $region42: #{patch_embed_3d_forward.3} parent=39 // pred_check_branch
        %1851 = sbr.rel (%p1849) target = $region44
      $region43: #{patch_embed_3d_forward.3} parent=39 // pred_region
        %s1852 = smul.u32 8, %s15
        %p1853 = scmp.lt.s32.totalorder %s1852, 15
        %s1854 = scalar_select %p1853, %s1852, 15
        %s1855 = smul.addr %s1854, 8
        %s1856 = scalar_lea.vmem %s3, %s1855
      $region44: #{patch_embed_3d_forward.3} parent=39 // pred_fallthru
        _
    $region40: #{patch_embed_3d_forward.3} parent=5 // pred_fallthru
      _
  $region6: #{patch_embed_3d_forward.3} parent=0 // loop_footer
    %s13 = sadd.s32 1, %s9
  $region7: #{patch_embed_3d_forward.3} parent=0 // loop_footer_branch
    %8 = sbr.rel target = $region3
  $region8: #{patch_embed_3d_forward.3} parent=0 // loop_exit
    _

</llo_original>
